<compile_context>
chip_gen: v5e
topology: v5e:2x2
jax: 0.10.0
libtpu: 0.0.40
codegen_flags: <defaults>
</compile_context>

<pallas_src>
import jax
import jax.numpy as jnp
from jax.experimental import pallas as pl
from jax.experimental.pallas import tpu as pltpu


def _round_up(n, m):
    return (n + m - 1) // m * m


def _sigmoid(x):
    # sigmoid(x) = 0.5*tanh(0.5*x) + 0.5 : single EUP op, adds/muls are VPU filler.
    return 0.5 * jnp.tanh(0.5 * x) + 0.5


def _softplus(x):
    # Numerically stable softplus (one exp + one log on the EUP).
    return jnp.maximum(x, 0.0) + jnp.log(1.0 + jnp.exp(-jnp.abs(x)))


def vae_kernel(x_ref, eps_ref,
               wq_ref, bq_ref,
               whead_ref, bhead_ref,      # fused + lane-padded [mu | logvar] head
               wp1_ref, bp1_ref,
               wp2_ref, bp2_ref,
               recon_ref, loss_ref):
    x = x_ref[...]                        # (BM, D_in) f32
    eps = eps_ref[...]                    # (BM, Zp)   f32 (padded lanes are 0)
    zp = eps.shape[1]
    wdt = wq_ref.dtype                    # MXU operand dtype (f32 or bf16)

    # ---- Encoder Q: Linear + sigmoid ----
    h = _sigmoid(
        jnp.dot(x.astype(wdt), wq_ref[...], preferred_element_type=jnp.float32)
        + bq_ref[...])

    # ---- Fused latent heads: one (BM,Hp) x (Hp,2*Zp) MXU matmul ----
    head = jnp.dot(h.astype(wdt), whead_ref[...],
                   preferred_element_type=jnp.float32) + bhead_ref[...]
    z_mu = head[:, :zp]                   # vreg-aligned slices (Zp == 128)
    z_logvar = head[:, zp:]

    # ---- Reparameterization: s = exp(lv/2); reuse e = s*s for the KL term ----
    s = jnp.exp(0.5 * z_logvar)
    z = z_mu + s * eps
    e = s * s

    # ---- Decoder P: Linear+sigmoid, Linear+sigmoid ----
    d1 = _sigmoid(
        jnp.dot(z.astype(wdt), wp1_ref[...], preferred_element_type=jnp.float32)
        + bp1_ref[...])
    logits = jnp.dot(d1.astype(wdt), wp2_ref[...],
                     preferred_element_type=jnp.float32) + bp2_ref[...]
    recon_ref[...] = _sigmoid(logits).astype(recon_ref.dtype)

    # ---- Per-row loss partials (reduced in the wrapper) ----
    # BCE from logits: -(x*log(sig(l)) + (1-x)*log(1-sig(l))) == softplus(l) - x*l
    # TODO(synk): PyTorch's binary_cross_entropy clamps log() at -100; the
    # logit-space form differs only for fully saturated outputs.
    bce_row = jnp.sum(_softplus(logits) - x * logits, axis=1, keepdims=True)
    # Padded (zeroed) mu/logvar lanes contribute exp(0) + 0 - 1 - 0 == 0.
    kl_row = jnp.sum(e + z_mu * z_mu - 1.0 - z_logvar, axis=1, keepdims=True)
    loss_ref[...] = (bce_row + 0.5 * kl_row).astype(loss_ref.dtype)


def prepare_params(params, mxu_dtype=jnp.float32):
    """One-time head fusion + lane-dense zero padding of the VAE parameters.

    Weights are stored (in, out). The mu/logvar heads are fused into one
    (Hp, 2*Zp) weight with mu in lanes [0, Zp) and logvar in [Zp, 2*Zp).
    All padding is exact zeros. Weights are cast to `mxu_dtype` (bf16 on
    v6e/v7x for MXU rate); biases stay f32 so elementwise math stays f32.
    """
    wq, bq, wmu, bmu, wlv, blv, wp1, bp1, wp2, bp2 = params
    d_in, h = wq.shape
    z = wmu.shape[1]
    hp = _round_up(h, 128)
    zp = _round_up(z, 128)

    def padto(a, rows, cols):
        return jnp.pad(a, ((0, rows - a.shape[0]), (0, cols - a.shape[1])))

    wq_p = padto(wq, d_in, hp)
    bq_p = padto(bq, 1, hp)
    whead = jnp.zeros((hp, 2 * zp), jnp.float32)
    whead = whead.at[:h, :z].set(wmu).at[:h, zp:zp + z].set(wlv)
    bhead = jnp.zeros((1, 2 * zp), jnp.float32)
    bhead = bhead.at[:, :z].set(bmu).at[:, zp:zp + z].set(blv)
    wp1_p = padto(wp1, zp, hp)
    bp1_p = padto(bp1, 1, hp)
    wp2_p = padto(wp2, hp, d_in)

    cast = lambda w: w.astype(mxu_dtype)
    return (cast(wq_p), bq_p, cast(whead), bhead,
            cast(wp1_p), bp1_p, cast(wp2_p), bp2)


@jax.jit
def vae_forward(x, eps, prepared):
    wq, bq, whead, bhead, wp1, bp1, wp2, bp2 = prepared
    B, d_in = x.shape
    hp = wq.shape[1]
    zp = whead.shape[1] // 2

    # Zero-pad eps to the padded latent width (padded z lanes stay exactly 0).
    if eps.shape[1] < zp:
        eps = jnp.pad(eps, ((0, 0), (0, zp - eps.shape[1])))

    # Row tile: 128 rows fills the MXU M-dim; fall back to B for tiny batches.
    bm = 128 if B % 128 == 0 else B
    assert B % bm == 0, "batch must be divisible by the row tile"
    grid = (B // bm,)

    row = lambda i: (i, 0)       # tiled over batch rows
    const = lambda i: (0, 0)     # VMEM-resident across the whole grid

    weight_bytes = sum(int(a.size) * a.dtype.itemsize
                       for a in (wq, bq, whead, bhead, wp1, bp1, wp2, bp2))
    cost = pl.CostEstimate(
        flops=2 * B * (d_in * hp + hp * 2 * zp + zp * hp + hp * d_in),
        transcendentals=B * (2 * hp + zp + 3 * d_in),
        bytes_accessed=int(x.size) * 4 + int(eps.size) * 4 + weight_bytes
        + B * d_in * 4 + B * 4)

    recon, loss_rows = pl.pallas_call(
        vae_kernel,
        grid=grid,
        in_specs=[
            pl.BlockSpec((bm, d_in), row),         # x
            pl.BlockSpec((bm, zp), row),           # eps
            pl.BlockSpec((d_in, hp), const),       # wq
            pl.BlockSpec((1, hp), const),          # bq
            pl.BlockSpec((hp, 2 * zp), const),     # whead (fused mu|logvar)
            pl.BlockSpec((1, 2 * zp), const),      # bhead
            pl.BlockSpec((zp, hp), const),         # wp1
            pl.BlockSpec((1, hp), const),          # bp1
            pl.BlockSpec((hp, d_in), const),       # wp2
            pl.BlockSpec((1, d_in), const),        # bp2
        ],
        out_specs=(
            pl.BlockSpec((bm, d_in), row),         # recon (lane-dense D_in)
            pl.BlockSpec((bm, 1), row),            # per-row loss partials
        ),
        # recon kept f32 to match the reference bit-for-bit; switch to bf16
        # here if downstream tolerates it (halves the dominant store traffic).
        out_shape=(jax.ShapeDtypeStruct((B, d_in), jnp.float32),
                   jax.ShapeDtypeStruct((B, 1), jnp.float32)),
        compiler_params=pltpu.CompilerParams(
            dimension_semantics=("parallel",)),
        cost_estimate=cost,
    )(x, eps, wq, bq, whead, bhead, wp1, bp1, wp2, bp2)

    # recon_loss = sum(BCE)/B ; kl_loss = mean(sum(kl_row, 1)/2) = sum/(2B)
    loss = jnp.sum(loss_rows) / B
    return recon, loss


def vae_reference(x, eps, params):
    """Pure-JAX reference matching the PyTorch forward() exactly."""
    (wq, bq, wmu, bmu, wlv, blv, wp1, bp1, wp2, bp2) = params
    h = jax.nn.sigmoid(x @ wq + bq)
    z_mu = h @ wmu + bmu
    z_logvar = h @ wlv + blv
    z = z_mu + jnp.exp(z_logvar / 2.0) * eps
    d1 = jax.nn.sigmoid(z @ wp1 + bp1)
    recon = jax.nn.sigmoid(d1 @ wp2 + bp2)
    B = x.shape[0]
    log_r = jnp.maximum(jnp.log(recon), -100.0)        # PyTorch BCE log clamp
    log_1mr = jnp.maximum(jnp.log(1.0 - recon), -100.0)
    recon_loss = jnp.sum(-(x * log_r + (1.0 - x) * log_1mr)) / B
    kl_loss = jnp.mean(
        jnp.sum(jnp.exp(z_logvar) + z_mu ** 2 - 1.0 - z_logvar, axis=1) / 2.0)
    return recon, recon_loss + kl_loss


def init_params(key, d_in, h, z):
    """Deterministic parameter init (weights stored as (in, out))."""
    ks = jax.random.split(key, 10)

    def lin(kw, kb, fan_in, fan_out):
        scale = 1.0 / jnp.sqrt(fan_in)
        w = jax.random.uniform(kw, (fan_in, fan_out), jnp.float32, -scale, scale)
        b = jax.random.uniform(kb, (1, fan_out), jnp.float32, -scale, scale)
        return w, b

    wq, bq = lin(ks[0], ks[1], d_in, h)
    wmu, bmu = lin(ks[2], ks[3], h, z)
    wlv, blv = lin(ks[4], ks[5], h, z)
    wp1, bp1 = lin(ks[6], ks[7], z, h)
    wp2, bp2 = lin(ks[8], ks[9], h, d_in)
    return (wq, bq, wmu, bmu, wlv, blv, wp1, bp1, wp2, bp2)


if __name__ == "__main__":
    # struct = [128, 64, 8]; B=256 exercises the 2-step batch grid (BM=128),
    # D_in=128 keeps the big recon store lane-dense/unmasked.
    B, D_IN, H, Z = 256, 128, 64, 8

    key = jax.random.PRNGKey(0)
    k_x, k_eps, k_p = jax.random.split(key, 3)

    # x in [0, 1] so binary_cross_entropy is well defined (as in the module).
    x = jax.random.uniform(k_x, (B, D_IN), jnp.float32)
    eps = jax.random.normal(k_eps, (B, Z), jnp.float32)  # eps from sample_z
    params = init_params(k_p, D_IN, H, Z)

    recon_ref, loss_ref = vae_reference(x, eps, params)

    # f32 MXU path (exact vs reference on all generations).
    prep_f32 = prepare_params(params, mxu_dtype=jnp.float32)
    recon, loss = vae_forward(x, eps, prep_f32)
    recon = jax.block_until_ready(recon)
    loss = jax.block_until_ready(loss)
    assert recon.shape == (B, D_IN)
    assert jnp.allclose(recon, recon_ref, atol=1e-5, rtol=1e-5)
    assert jnp.allclose(loss, loss_ref, atol=1e-4, rtol=1e-4)

    # bf16 MXU-operand path (v6e/v7x peak rate); elementwise math stays f32.
    prep_bf16 = prepare_params(params, mxu_dtype=jnp.bfloat16)
    recon16, loss16 = vae_forward(x, eps, prep_bf16)
    recon16 = jax.block_until_ready(recon16)
    loss16 = jax.block_until_ready(loss16)
    assert jnp.allclose(recon16, recon_ref, atol=2e-2, rtol=2e-2)
    assert jnp.allclose(loss16, loss_ref, rtol=2e-2)

    print("KERNEL_OK")
</pallas_src>

<mosaic_0001>
module attributes {stable_mosaic.version = 11 : i64} {
  func.func @vae_kernel(%arg0: i32, %arg1: memref<128x128xf32, #tpu.memory_space<vmem>>, %arg2: memref<128x128xf32, #tpu.memory_space<vmem>>, %arg3: memref<128x128xf32, #tpu.memory_space<vmem>>, %arg4: memref<1x128xf32, #tpu.memory_space<vmem>>, %arg5: memref<128x256xf32, #tpu.memory_space<vmem>>, %arg6: memref<1x256xf32, #tpu.memory_space<vmem>>, %arg7: memref<128x128xf32, #tpu.memory_space<vmem>>, %arg8: memref<1x128xf32, #tpu.memory_space<vmem>>, %arg9: memref<128x128xf32, #tpu.memory_space<vmem>>, %arg10: memref<1x128xf32, #tpu.memory_space<vmem>>, %arg11: memref<128x128xf32, #tpu.memory_space<vmem>>, %arg12: memref<128x1xf32, #tpu.memory_space<vmem>>) attributes {dimension_semantics = [#tpu.dimension_semantics<parallel>], iteration_bounds = array<i64: 2>, scalar_prefetch = 0 : i64, scratch_operands = 0 : i64, tpu.core_type = #tpu.core_type<tc>, window_params = [{transform_indices = @transform_0, window_bounds = array<i64: 128, 128>}, {transform_indices = @transform_1, window_bounds = array<i64: 128, 128>}, {pipeline_mode = #tpu.pipeline_mode<synchronous>, transform_indices = @transform_2, window_bounds = array<i64: 128, 128>}, {pipeline_mode = #tpu.pipeline_mode<synchronous>, transform_indices = @transform_3, window_bounds = array<i64: 1, 128>}, {pipeline_mode = #tpu.pipeline_mode<synchronous>, transform_indices = @transform_4, window_bounds = array<i64: 128, 256>}, {pipeline_mode = #tpu.pipeline_mode<synchronous>, transform_indices = @transform_5, window_bounds = array<i64: 1, 256>}, {pipeline_mode = #tpu.pipeline_mode<synchronous>, transform_indices = @transform_6, window_bounds = array<i64: 128, 128>}, {pipeline_mode = #tpu.pipeline_mode<synchronous>, transform_indices = @transform_7, window_bounds = array<i64: 1, 128>}, {pipeline_mode = #tpu.pipeline_mode<synchronous>, transform_indices = @transform_8, window_bounds = array<i64: 128, 128>}, {pipeline_mode = #tpu.pipeline_mode<synchronous>, transform_indices = @transform_9, window_bounds = array<i64: 1, 128>}, {transform_indices = @transform_10, window_bounds = array<i64: 128, 128>}, {transform_indices = @transform_11, window_bounds = array<i64: 128, 1>}]} {
    %c0 = arith.constant 0 : index
    %c0_0 = arith.constant 0 : index
    %0 = vector.load %arg1[%c0, %c0_0] : memref<128x128xf32, #tpu.memory_space<vmem>>, vector<128x128xf32>
    %c0_1 = arith.constant 0 : index
    %c0_2 = arith.constant 0 : index
    %1 = vector.load %arg2[%c0_1, %c0_2] : memref<128x128xf32, #tpu.memory_space<vmem>>, vector<128x128xf32>
    %c0_3 = arith.constant 0 : index
    %c0_4 = arith.constant 0 : index
    %2 = vector.load %arg3[%c0_3, %c0_4] : memref<128x128xf32, #tpu.memory_space<vmem>>, vector<128x128xf32>
    %cst = arith.constant dense<0.000000e+00> : vector<128x128xf32>
    %3 = tpu.matmul %0, %2, %cst {dimension_numbers = #tpu.dot_dimension_numbers<[1], [0], [0], [1], [0, 0, 1, 1], [], []>} : vector<128x128xf32>, vector<128x128xf32>, vector<128x128xf32> -> vector<128x128xf32>
    %c0_5 = arith.constant 0 : index
    %c0_6 = arith.constant 0 : index
    %4 = vector.load %arg4[%c0_5, %c0_6] : memref<1x128xf32, #tpu.memory_space<vmem>>, vector<1x128xf32>
    %5 = vector.broadcast %4 : vector<1x128xf32> to vector<128x128xf32>
    %6 = arith.addf %3, %5 : vector<128x128xf32>
    %cst_7 = arith.constant 5.000000e-01 : f32
    %7 = vector.broadcast %cst_7 : f32 to vector<128x128xf32>
    %8 = arith.mulf %7, %6 : vector<128x128xf32>
    %9 = math.tanh %8 : vector<128x128xf32>
    %cst_8 = arith.constant 5.000000e-01 : f32
    %10 = vector.broadcast %cst_8 : f32 to vector<128x128xf32>
    %11 = arith.mulf %10, %9 : vector<128x128xf32>
    %cst_9 = arith.constant 5.000000e-01 : f32
    %12 = vector.broadcast %cst_9 : f32 to vector<128x128xf32>
    %13 = arith.addf %11, %12 : vector<128x128xf32>
    %c0_10 = arith.constant 0 : index
    %c0_11 = arith.constant 0 : index
    %14 = vector.load %arg5[%c0_10, %c0_11] : memref<128x256xf32, #tpu.memory_space<vmem>>, vector<128x256xf32>
    %cst_12 = arith.constant dense<0.000000e+00> : vector<128x256xf32>
    %15 = tpu.matmul %13, %14, %cst_12 {dimension_numbers = #tpu.dot_dimension_numbers<[1], [0], [0], [1], [0, 0, 1, 1], [], []>} : vector<128x128xf32>, vector<128x256xf32>, vector<128x256xf32> -> vector<128x256xf32>
    %c0_13 = arith.constant 0 : index
    %c0_14 = arith.constant 0 : index
    %16 = vector.load %arg6[%c0_13, %c0_14] : memref<1x256xf32, #tpu.memory_space<vmem>>, vector<1x256xf32>
    %17 = vector.broadcast %16 : vector<1x256xf32> to vector<128x256xf32>
    %18 = arith.addf %15, %17 : vector<128x256xf32>
    %19 = vector.extract_strided_slice %18 {offsets = [0, 0], sizes = [128, 128], strides = [1, 1]} : vector<128x256xf32> to vector<128x128xf32>
    %20 = vector.extract_strided_slice %18 {offsets = [0, 128], sizes = [128, 128], strides = [1, 1]} : vector<128x256xf32> to vector<128x128xf32>
    %cst_15 = arith.constant 5.000000e-01 : f32
    %21 = vector.broadcast %cst_15 : f32 to vector<128x128xf32>
    %22 = arith.mulf %21, %20 : vector<128x128xf32>
    %23 = math.exp %22 : vector<128x128xf32>
    %24 = arith.mulf %23, %1 : vector<128x128xf32>
    %25 = arith.addf %19, %24 : vector<128x128xf32>
    %26 = arith.mulf %23, %23 : vector<128x128xf32>
    %c0_16 = arith.constant 0 : index
    %c0_17 = arith.constant 0 : index
    %27 = vector.load %arg7[%c0_16, %c0_17] : memref<128x128xf32, #tpu.memory_space<vmem>>, vector<128x128xf32>
    %cst_18 = arith.constant dense<0.000000e+00> : vector<128x128xf32>
    %28 = tpu.matmul %25, %27, %cst_18 {dimension_numbers = #tpu.dot_dimension_numbers<[1], [0], [0], [1], [0, 0, 1, 1], [], []>} : vector<128x128xf32>, vector<128x128xf32>, vector<128x128xf32> -> vector<128x128xf32>
    %c0_19 = arith.constant 0 : index
    %c0_20 = arith.constant 0 : index
    %29 = vector.load %arg8[%c0_19, %c0_20] : memref<1x128xf32, #tpu.memory_space<vmem>>, vector<1x128xf32>
    %30 = vector.broadcast %29 : vector<1x128xf32> to vector<128x128xf32>
    %31 = arith.addf %28, %30 : vector<128x128xf32>
    %cst_21 = arith.constant 5.000000e-01 : f32
    %32 = vector.broadcast %cst_21 : f32 to vector<128x128xf32>
    %33 = arith.mulf %32, %31 : vector<128x128xf32>
    %34 = math.tanh %33 : vector<128x128xf32>
    %cst_22 = arith.constant 5.000000e-01 : f32
    %35 = vector.broadcast %cst_22 : f32 to vector<128x128xf32>
    %36 = arith.mulf %35, %34 : vector<128x128xf32>
    %cst_23 = arith.constant 5.000000e-01 : f32
    %37 = vector.broadcast %cst_23 : f32 to vector<128x128xf32>
    %38 = arith.addf %36, %37 : vector<128x128xf32>
    %c0_24 = arith.constant 0 : index
    %c0_25 = arith.constant 0 : index
    %39 = vector.load %arg9[%c0_24, %c0_25] : memref<128x128xf32, #tpu.memory_space<vmem>>, vector<128x128xf32>
    %cst_26 = arith.constant dense<0.000000e+00> : vector<128x128xf32>
    %40 = tpu.matmul %38, %39, %cst_26 {dimension_numbers = #tpu.dot_dimension_numbers<[1], [0], [0], [1], [0, 0, 1, 1], [], []>} : vector<128x128xf32>, vector<128x128xf32>, vector<128x128xf32> -> vector<128x128xf32>
    %c0_27 = arith.constant 0 : index
    %c0_28 = arith.constant 0 : index
    %41 = vector.load %arg10[%c0_27, %c0_28] : memref<1x128xf32, #tpu.memory_space<vmem>>, vector<1x128xf32>
    %42 = vector.broadcast %41 : vector<1x128xf32> to vector<128x128xf32>
    %43 = arith.addf %40, %42 : vector<128x128xf32>
    %cst_29 = arith.constant 5.000000e-01 : f32
    %44 = vector.broadcast %cst_29 : f32 to vector<128x128xf32>
    %45 = arith.mulf %44, %43 : vector<128x128xf32>
    %46 = math.tanh %45 : vector<128x128xf32>
    %cst_30 = arith.constant 5.000000e-01 : f32
    %47 = vector.broadcast %cst_30 : f32 to vector<128x128xf32>
    %48 = arith.mulf %47, %46 : vector<128x128xf32>
    %cst_31 = arith.constant 5.000000e-01 : f32
    %49 = vector.broadcast %cst_31 : f32 to vector<128x128xf32>
    %50 = arith.addf %48, %49 : vector<128x128xf32>
    %c0_32 = arith.constant 0 : index
    %c0_33 = arith.constant 0 : index
    %51 = vector.load %arg11[%c0_32, %c0_33] : memref<128x128xf32, #tpu.memory_space<vmem>>, vector<128x128xf32>
    tpu.vector_store %arg11[%c0_32, %c0_33], %50 {strides = array<i32>} : memref<128x128xf32, #tpu.memory_space<vmem>>, vector<128x128xf32>,
    %cst_34 = arith.constant 0.000000e+00 : f32
    %52 = vector.broadcast %cst_34 : f32 to vector<128x128xf32>
    %53 = arith.maximumf %43, %52 : vector<128x128xf32>
    %54 = math.absf %43 : vector<128x128xf32>
    %cst_35 = arith.constant 0.000000e+00 : f32
    %55 = vector.broadcast %cst_35 : f32 to vector<128x128xf32>
    %56 = arith.subf %55, %54 : vector<128x128xf32>
    %57 = math.exp %56 : vector<128x128xf32>
    %cst_36 = arith.constant 1.000000e+00 : f32
    %58 = vector.broadcast %cst_36 : f32 to vector<128x128xf32>
    %59 = arith.addf %58, %57 : vector<128x128xf32>
    %60 = math.log %59 : vector<128x128xf32>
    %61 = arith.addf %53, %60 : vector<128x128xf32>
    %62 = arith.mulf %0, %43 : vector<128x128xf32>
    %63 = arith.subf %61, %62 : vector<128x128xf32>
    %cst_37 = arith.constant dense<0.000000e+00> : vector<128xf32>
    %64 = vector.multi_reduction <add>, %63, %cst_37 [1] : vector<128x128xf32> to vector<128xf32>
    %65 = vector.shape_cast %64 : vector<128xf32> to vector<128x1xf32>
    %66 = arith.mulf %19, %19 : vector<128x128xf32>
    %67 = arith.addf %26, %66 : vector<128x128xf32>
    %cst_38 = arith.constant 1.000000e+00 : f32
    %68 = vector.broadcast %cst_38 : f32 to vector<128x128xf32>
    %69 = arith.subf %67, %68 : vector<128x128xf32>
    %70 = arith.subf %69, %20 : vector<128x128xf32>
    %cst_39 = arith.constant dense<0.000000e+00> : vector<128xf32>
    %71 = vector.multi_reduction <add>, %70, %cst_39 [1] : vector<128x128xf32> to vector<128xf32>
    %72 = vector.shape_cast %71 : vector<128xf32> to vector<128x1xf32>
    %cst_40 = arith.constant 5.000000e-01 : f32
    %73 = vector.broadcast %cst_40 : f32 to vector<128x1xf32>
    %74 = arith.mulf %73, %72 : vector<128x1xf32>
    %75 = arith.addf %65, %74 : vector<128x1xf32>
    %c0_41 = arith.constant 0 : index
    %c0_42 = arith.constant 0 : index
    %76 = vector.load %arg12[%c0_41, %c0_42] : memref<128x1xf32, #tpu.memory_space<vmem>>, vector<128x1xf32>
    tpu.vector_store %arg12[%c0_41, %c0_42], %75 {strides = array<i32>} : memref<128x1xf32, #tpu.memory_space<vmem>>, vector<128x1xf32>,
    return
  }
  func.func @transform_0(%arg0: i32) -> (i32, i32) {
    %c0_i32 = arith.constant 0 : i32
    %c0_i32_0 = arith.constant 0 : i32
    return %arg0, %c0_i32 : i32, i32
  }
  func.func @transform_1(%arg0: i32) -> (i32, i32) {
    %c0_i32 = arith.constant 0 : i32
    %c0_i32_0 = arith.constant 0 : i32
    return %arg0, %c0_i32 : i32, i32
  }
  func.func @transform_2(%arg0: i32) -> (i32, i32) {
    %c0_i32 = arith.constant 0 : i32
    %c0_i32_0 = arith.constant 0 : i32
    %c0_i32_1 = arith.constant 0 : i32
    return %c0_i32, %c0_i32_0 : i32, i32
  }
  func.func @transform_3(%arg0: i32) -> (i32, i32) {
    %c0_i32 = arith.constant 0 : i32
    %c0_i32_0 = arith.constant 0 : i32
    %c0_i32_1 = arith.constant 0 : i32
    return %c0_i32, %c0_i32_0 : i32, i32
  }
  func.func @transform_4(%arg0: i32) -> (i32, i32) {
    %c0_i32 = arith.constant 0 : i32
    %c0_i32_0 = arith.constant 0 : i32
    %c0_i32_1 = arith.constant 0 : i32
    return %c0_i32, %c0_i32_0 : i32, i32
  }
  func.func @transform_5(%arg0: i32) -> (i32, i32) {
    %c0_i32 = arith.constant 0 : i32
    %c0_i32_0 = arith.constant 0 : i32
    %c0_i32_1 = arith.constant 0 : i32
    return %c0_i32, %c0_i32_0 : i32, i32
  }
  func.func @transform_6(%arg0: i32) -> (i32, i32) {
    %c0_i32 = arith.constant 0 : i32
    %c0_i32_0 = arith.constant 0 : i32
    %c0_i32_1 = arith.constant 0 : i32
    return %c0_i32, %c0_i32_0 : i32, i32
  }
  func.func @transform_7(%arg0: i32) -> (i32, i32) {
    %c0_i32 = arith.constant 0 : i32
    %c0_i32_0 = arith.constant 0 : i32
    %c0_i32_1 = arith.constant 0 : i32
    return %c0_i32, %c0_i32_0 : i32, i32
  }
  func.func @transform_8(%arg0: i32) -> (i32, i32) {
    %c0_i32 = arith.constant 0 : i32
    %c0_i32_0 = arith.constant 0 : i32
    %c0_i32_1 = arith.constant 0 : i32
    return %c0_i32, %c0_i32_0 : i32, i32
  }
  func.func @transform_9(%arg0: i32) -> (i32, i32) {
    %c0_i32 = arith.constant 0 : i32
    %c0_i32_0 = arith.constant 0 : i32
    %c0_i32_1 = arith.constant 0 : i32
    return %c0_i32, %c0_i32_0 : i32, i32
  }
  func.func @transform_10(%arg0: i32) -> (i32, i32) {
    %c0_i32 = arith.constant 0 : i32
    %c0_i32_0 = arith.constant 0 : i32
    return %arg0, %c0_i32 : i32, i32
  }
  func.func @transform_11(%arg0: i32) -> (i32, i32) {
    %c0_i32 = arith.constant 0 : i32
    %c0_i32_0 = arith.constant 0 : i32
    return %arg0, %c0_i32 : i32, i32
  }
}

</mosaic_0001>

<llo_original>
// kernel: vae_forward.1
$region0: #{vae_forward.1}
  #allocation0 [shape = 'u32[]', space=smem, size = 0x4, offset = 0x4, fixed_abs, tag = 'smem constant byte address 0x4 - core index']
  #allocation1 [shape = 'u32[72,128]{1,0:T(1,128)}', space=vmem, size = 0x9000, scoped, tag = 'internal scratch']
  %s0 = inlined_call_operand.vmem [shape: f32[256,128], index: 0, kind: input, shape index: {}]
  %s1 = inlined_call_operand.vmem [shape: f32[256,128], index: 1, kind: input, shape index: {}]
  %s2 = inlined_call_operand.vmem [shape: f32[128,128], index: 2, kind: input, shape index: {}]
  %s3 = inlined_call_operand.vmem [shape: f32[1,128], index: 3, kind: input, shape index: {}]
  %s4 = inlined_call_operand.vmem [shape: f32[128,256], index: 4, kind: input, shape index: {}]
  %s5 = inlined_call_operand.vmem [shape: f32[1,256], index: 5, kind: input, shape index: {}]
  %s6 = inlined_call_operand.vmem [shape: f32[128,128], index: 6, kind: input, shape index: {}]
  %s7 = inlined_call_operand.vmem [shape: f32[1,128], index: 7, kind: input, shape index: {}]
  %s8 = inlined_call_operand.hbm [shape: f32[128,128], index: 8, kind: input, shape index: {}]
  %s9 = inlined_call_operand.vmem [shape: f32[1,128], index: 9, kind: input, shape index: {}]
  %s10 = inlined_call_operand.hbm [shape: f32[256,128], index: 10, kind: output, shape index: {0}]
  %s11 = inlined_call_operand.vmem [shape: f32[256,1], index: 11, kind: output, shape index: {1}]
  %12 = xla_tuple %s10, %s11
  %s13 = sld [smem:[#allocation0]]
  $region85: #{vae_forward.1} parent=0
    _
  %s15 = ssub.s32 1, %s13
  %s16 = scalar_select 0, %s15, %s13
  $region1: #{vae_forward.1} parent=0
    #allocation2 [shape = 'u8[65536]{0}', space=vmem, size = 0x10000, scoped, tag = 'input window, operand 8, single buffered']
    #allocation3 [shape = 's32[2]{0}', space=sflag, size = 0x8, scoped, tag = 'scoped memory for vae_forward.1']
    #allocation4 [shape = 's32[2]{0}', space=sflag, size = 0x8, scoped, tag = 'scoped memory for vae_forward.1']
    #allocation5 [shape = 'u8[131072]{0}', space=vmem, size = 0x20000, scoped, tag = 'output window, operand 0']
    %17 = vsyncpa [#allocation3], 0
    %18 = vsyncpa [#allocation4], 0
    %s19 = scalar_lea.sflag [#allocation4], 1
    %20 = vsyncpa %s19, 0
    loop: start=0, step=1, limit=4
    $region2: #{vae_forward.1} parent=1 // loop_pre_header
      _
    $region3: #{vae_forward.1} parent=1 // loop_header
      %s22 = sphi 0, %s26
      %p23 = scmp.ge.s32.totalorder %s22, 4
      %s32 = sphi 0, %s34
      %s35 = sphi 0, %s32
      %s36 = sphi 0, %s35
      %s52 = sphi 0, %s36
      %s58 = sphi 0, %s60
      %s61 = sphi 0, %s58
      %s62 = sphi 0, %s61
      %s78 = sphi 0, %s62
      %s82 = sphi 0, %s82
      %s84 = sphi 0, %s82
      %s85 = sphi 0, %s84
      %s99 = sphi 0, %s85
      %s103 = sphi 0, %s103
      %s105 = sphi 0, %s103
      %s106 = sphi 0, %s105
      %s120 = sphi 0, %s106
      %s124 = sphi 0, %s124
      %s126 = sphi 0, %s124
      %s127 = sphi 0, %s126
      %s141 = sphi 0, %s127
      %s145 = sphi 0, %s145
      %s147 = sphi 0, %s145
      %s148 = sphi 0, %s147
      %s162 = sphi 0, %s148
      %s166 = sphi 0, %s166
      %s168 = sphi 0, %s166
      %s169 = sphi 0, %s168
      %s183 = sphi 0, %s169
      %s187 = sphi 0, %s187
      %s189 = sphi 0, %s187
      %s190 = sphi 0, %s189
      %s204 = sphi 0, %s190
      %s208 = sphi 0, %s208
      %s210 = sphi 0, %s208
      %s211 = sphi 0, %s210
      %s225 = sphi 0, %s211
      %s229 = sphi 0, %s229
      %s231 = sphi 0, %s229
      %s232 = sphi 0, %s231
      %s246 = sphi 0, %s232
      %s252 = sphi 0, %s254
      %s255 = sphi 0, %s252
      %s256 = sphi 0, %s255
      %s272 = sphi 0, %s256
      %s278 = sphi 0, %s280
      %s281 = sphi 0, %s278
      %s282 = sphi 0, %s281
      %s298 = sphi 0, %s282
    $region4: #{vae_forward.1} parent=1 // loop_header_branch
      %25 = sbr.rel (%p23) target = $region8
    $region5: #{vae_forward.1} parent=1 // loop_body
      %s27 = ssub.s32 %s22, 1
      %s28 = ssub.s32 %s22, 2
      %s29 = sadd.s32 %s22, 1
      %s30 = ssub.s32 %s22, %s29
      %p31 = scmp.eq.s32.totalorder %s30, 0
      %s33 = sadd.s32 %s32, 1
      %s34 = scalar_select %p31, %s32, %s33
      %p37 = pneg %p31
      %p38 = scmp.eq.s32.totalorder %s22, 1
      %p39 = por %p37, %p38
      %p40 = scmp.ne.s32.totalorder %s32, %s35
      %p41 = scmp.eq.s32.totalorder %s22, 0
      %p42 = por %p40, %p41
      %p43 = scmp.ne.s32.totalorder %s32, %s35
      %p44 = scmp.eq.s32.totalorder %s27, 1
      %p45 = por %p43, %p44
      %p46 = scmp.ne.s32.totalorder %s35, %s36
      %p47 = scmp.eq.s32.totalorder %s27, 0
      %p48 = por %p46, %p47
      %p49 = scmp.ne.s32.totalorder %s35, %s36
      %p50 = scmp.eq.s32.totalorder %s28, 1
      %p51 = por %p49, %p50
      %p53 = scmp.ne.s32.totalorder %s36, %s52
      %p54 = scmp.eq.s32.totalorder %s28, 0
      %p55 = por %p53, %p54
      %s56 = ssub.s32 %s22, %s29
      %p57 = scmp.eq.s32.totalorder %s56, 0
      %s59 = sadd.s32 %s58, 1
      %s60 = scalar_select %p57, %s58, %s59
      %p63 = pneg %p57
      %p64 = scmp.eq.s32.totalorder %s22, 1
      %p65 = por %p63, %p64
      %p66 = scmp.ne.s32.totalorder %s58, %s61
      %p67 = scmp.eq.s32.totalorder %s22, 0
      %p68 = por %p66, %p67
      %p69 = scmp.ne.s32.totalorder %s58, %s61
      %p70 = scmp.eq.s32.totalorder %s27, 1
      %p71 = por %p69, %p70
      %p72 = scmp.ne.s32.totalorder %s61, %s62
      %p73 = scmp.eq.s32.totalorder %s27, 0
      %p74 = por %p72, %p73
      %p75 = scmp.ne.s32.totalorder %s61, %s62
      %p76 = scmp.eq.s32.totalorder %s28, 1
      %p77 = por %p75, %p76
      %p79 = scmp.ne.s32.totalorder %s62, %s78
      %p80 = scmp.eq.s32.totalorder %s28, 0
      %p81 = por %p79, %p80
      %s83 = sadd.s32 %s82, 1
      %p86 = scmp.eq.s32.totalorder %s22, 1
      %p87 = scmp.ne.s32.totalorder %s82, %s84
      %p88 = scmp.eq.s32.totalorder %s22, 0
      %p89 = por %p87, %p88
      %p90 = scmp.ne.s32.totalorder %s82, %s84
      %p91 = scmp.eq.s32.totalorder %s27, 1
      %p92 = por %p90, %p91
      %p93 = scmp.ne.s32.totalorder %s84, %s85
      %p94 = scmp.eq.s32.totalorder %s27, 0
      %p95 = por %p93, %p94
      %p96 = scmp.ne.s32.totalorder %s84, %s85
      %p97 = scmp.eq.s32.totalorder %s28, 1
      %p98 = por %p96, %p97
      %p100 = scmp.ne.s32.totalorder %s85, %s99
      %p101 = scmp.eq.s32.totalorder %s28, 0
      %p102 = por %p100, %p101
      %s104 = sadd.s32 %s103, 1
      %p107 = scmp.eq.s32.totalorder %s22, 1
      %p108 = scmp.ne.s32.totalorder %s103, %s105
      %p109 = scmp.eq.s32.totalorder %s22, 0
      %p110 = por %p108, %p109
      %p111 = scmp.ne.s32.totalorder %s103, %s105
      %p112 = scmp.eq.s32.totalorder %s27, 1
      %p113 = por %p111, %p112
      %p114 = scmp.ne.s32.totalorder %s105, %s106
      %p115 = scmp.eq.s32.totalorder %s27, 0
      %p116 = por %p114, %p115
      %p117 = scmp.ne.s32.totalorder %s105, %s106
      %p118 = scmp.eq.s32.totalorder %s28, 1
      %p119 = por %p117, %p118
      %p121 = scmp.ne.s32.totalorder %s106, %s120
      %p122 = scmp.eq.s32.totalorder %s28, 0
      %p123 = por %p121, %p122
      %s125 = sadd.s32 %s124, 1
      %p128 = scmp.eq.s32.totalorder %s22, 1
      %p129 = scmp.ne.s32.totalorder %s124, %s126
      %p130 = scmp.eq.s32.totalorder %s22, 0
      %p131 = por %p129, %p130
      %p132 = scmp.ne.s32.totalorder %s124, %s126
      %p133 = scmp.eq.s32.totalorder %s27, 1
      %p134 = por %p132, %p133
      %p135 = scmp.ne.s32.totalorder %s126, %s127
      %p136 = scmp.eq.s32.totalorder %s27, 0
      %p137 = por %p135, %p136
      %p138 = scmp.ne.s32.totalorder %s126, %s127
      %p139 = scmp.eq.s32.totalorder %s28, 1
      %p140 = por %p138, %p139
      %p142 = scmp.ne.s32.totalorder %s127, %s141
      %p143 = scmp.eq.s32.totalorder %s28, 0
      %p144 = por %p142, %p143
      %s146 = sadd.s32 %s145, 1
      %p149 = scmp.eq.s32.totalorder %s22, 1
      %p150 = scmp.ne.s32.totalorder %s145, %s147
      %p151 = scmp.eq.s32.totalorder %s22, 0
      %p152 = por %p150, %p151
      %p153 = scmp.ne.s32.totalorder %s145, %s147
      %p154 = scmp.eq.s32.totalorder %s27, 1
      %p155 = por %p153, %p154
      %p156 = scmp.ne.s32.totalorder %s147, %s148
      %p157 = scmp.eq.s32.totalorder %s27, 0
      %p158 = por %p156, %p157
      %p159 = scmp.ne.s32.totalorder %s147, %s148
      %p160 = scmp.eq.s32.totalorder %s28, 1
      %p161 = por %p159, %p160
      %p163 = scmp.ne.s32.totalorder %s148, %s162
      %p164 = scmp.eq.s32.totalorder %s28, 0
      %p165 = por %p163, %p164
      %s167 = sadd.s32 %s166, 1
      %p170 = scmp.eq.s32.totalorder %s22, 1
      %p171 = scmp.ne.s32.totalorder %s166, %s168
      %p172 = scmp.eq.s32.totalorder %s22, 0
      %p173 = por %p171, %p172
      %p174 = scmp.ne.s32.totalorder %s166, %s168
      %p175 = scmp.eq.s32.totalorder %s27, 1
      %p176 = por %p174, %p175
      %p177 = scmp.ne.s32.totalorder %s168, %s169
      %p178 = scmp.eq.s32.totalorder %s27, 0
      %p179 = por %p177, %p178
      %p180 = scmp.ne.s32.totalorder %s168, %s169
      %p181 = scmp.eq.s32.totalorder %s28, 1
      %p182 = por %p180, %p181
      %p184 = scmp.ne.s32.totalorder %s169, %s183
      %p185 = scmp.eq.s32.totalorder %s28, 0
      %p186 = por %p184, %p185
      %s188 = sadd.s32 %s187, 1
      %p191 = scmp.eq.s32.totalorder %s22, 1
      %p192 = scmp.ne.s32.totalorder %s187, %s189
      %p193 = scmp.eq.s32.totalorder %s22, 0
      %p194 = por %p192, %p193
      %p195 = scmp.ne.s32.totalorder %s187, %s189
      %p196 = scmp.eq.s32.totalorder %s27, 1
      %p197 = por %p195, %p196
      %p198 = scmp.ne.s32.totalorder %s189, %s190
      %p199 = scmp.eq.s32.totalorder %s27, 0
      %p200 = por %p198, %p199
      %p201 = scmp.ne.s32.totalorder %s189, %s190
      %p202 = scmp.eq.s32.totalorder %s28, 1
      %p203 = por %p201, %p202
      %p205 = scmp.ne.s32.totalorder %s190, %s204
      %p206 = scmp.eq.s32.totalorder %s28, 0
      %p207 = por %p205, %p206
      %s209 = sadd.s32 %s208, 1
      %p212 = scmp.eq.s32.totalorder %s22, 1
      %p213 = scmp.ne.s32.totalorder %s208, %s210
      %p214 = scmp.eq.s32.totalorder %s22, 0
      %p215 = por %p213, %p214
      %p216 = scmp.ne.s32.totalorder %s208, %s210
      %p217 = scmp.eq.s32.totalorder %s27, 1
      %p218 = por %p216, %p217
      %p219 = scmp.ne.s32.totalorder %s210, %s211
      %p220 = scmp.eq.s32.totalorder %s27, 0
      %p221 = por %p219, %p220
      %p222 = scmp.ne.s32.totalorder %s210, %s211
      %p223 = scmp.eq.s32.totalorder %s28, 1
      %p224 = por %p222, %p223
      %p226 = scmp.ne.s32.totalorder %s211, %s225
      %p227 = scmp.eq.s32.totalorder %s28, 0
      %p228 = por %p226, %p227
      %s230 = sadd.s32 %s229, 1
      %p233 = scmp.eq.s32.totalorder %s22, 1
      %p234 = scmp.ne.s32.totalorder %s229, %s231
      %p235 = scmp.eq.s32.totalorder %s22, 0
      %p236 = por %p234, %p235
      %p237 = scmp.ne.s32.totalorder %s229, %s231
      %p238 = scmp.eq.s32.totalorder %s27, 1
      %p239 = por %p237, %p238
      %p240 = scmp.ne.s32.totalorder %s231, %s232
      %p241 = scmp.eq.s32.totalorder %s27, 0
      %p242 = por %p240, %p241
      %p243 = scmp.ne.s32.totalorder %s231, %s232
      %p244 = scmp.eq.s32.totalorder %s28, 1
      %p245 = por %p243, %p244
      %p247 = scmp.ne.s32.totalorder %s232, %s246
      %p248 = scmp.eq.s32.totalorder %s28, 0
      %p249 = por %p247, %p248
      %s250 = ssub.s32 %s22, %s29
      %p251 = scmp.eq.s32.totalorder %s250, 0
      %s253 = sadd.s32 %s252, 1
      %s254 = scalar_select %p251, %s252, %s253
      %p257 = pneg %p251
      %p258 = scmp.eq.s32.totalorder %s22, 1
      %p259 = por %p257, %p258
      %p260 = scmp.ne.s32.totalorder %s252, %s255
      %p261 = scmp.eq.s32.totalorder %s22, 0
      %p262 = por %p260, %p261
      %p263 = scmp.ne.s32.totalorder %s252, %s255
      %p264 = scmp.eq.s32.totalorder %s27, 1
      %p265 = por %p263, %p264
      %p266 = scmp.ne.s32.totalorder %s255, %s256
      %p267 = scmp.eq.s32.totalorder %s27, 0
      %p268 = por %p266, %p267
      %p269 = scmp.ne.s32.totalorder %s255, %s256
      %p270 = scmp.eq.s32.totalorder %s28, 1
      %p271 = por %p269, %p270
      %p273 = scmp.ne.s32.totalorder %s256, %s272
      %p274 = scmp.eq.s32.totalorder %s28, 0
      %p275 = por %p273, %p274
      %s276 = ssub.s32 %s22, %s29
      %p277 = scmp.eq.s32.totalorder %s276, 0
      %s279 = sadd.s32 %s278, 1
      %s280 = scalar_select %p277, %s278, %s279
      %p283 = pneg %p277
      %p284 = scmp.eq.s32.totalorder %s22, 1
      %p285 = por %p283, %p284
      %p286 = scmp.ne.s32.totalorder %s278, %s281
      %p287 = scmp.eq.s32.totalorder %s22, 0
      %p288 = por %p286, %p287
      %p289 = scmp.ne.s32.totalorder %s278, %s281
      %p290 = scmp.eq.s32.totalorder %s27, 1
      %p291 = por %p289, %p290
      %p292 = scmp.ne.s32.totalorder %s281, %s282
      %p293 = scmp.eq.s32.totalorder %s27, 0
      %p294 = por %p292, %p293
      %p295 = scmp.ne.s32.totalorder %s281, %s282
      %p296 = scmp.eq.s32.totalorder %s28, 1
      %p297 = por %p295, %p296
      %p299 = scmp.ne.s32.totalorder %s282, %s298
      %p300 = scmp.eq.s32.totalorder %s28, 0
      %p301 = por %p299, %p300
      %p302 = scmp.le.s32.totalorder 1, %s22
      %p303 = scmp.lt.s32.totalorder %s22, 3
      %p304 = pnand %p302, %p303
      %p305 = pneg %p304
      // Predicated region
      $region9: #{vae_forward.1} parent=5 // pred_check
        _
      $region10: #{vae_forward.1} parent=5 // pred_check_branch
        %307 = sbr.rel (%p304) target = $region12
      $region11: #{vae_forward.1} parent=5 // pred_region
        %s308 = ssub.s32 %s22, 1
        // Predicated region
        $region13: #{vae_forward.1} parent=11 // pred_check
          %p309 = pneg %p95
        $region14: #{vae_forward.1} parent=11 // pred_check_branch
          %311 = sbr.rel (%p309) target = $region16
        $region15: #{vae_forward.1} parent=11 // pred_region
          _
        $region16: #{vae_forward.1} parent=11 // pred_fallthru
          _
        // Predicated region
        $region17: #{vae_forward.1} parent=11 // pred_check
          %p312 = pneg %p116
        $region18: #{vae_forward.1} parent=11 // pred_check_branch
          %314 = sbr.rel (%p312) target = $region20
        $region19: #{vae_forward.1} parent=11 // pred_region
          _
        $region20: #{vae_forward.1} parent=11 // pred_fallthru
          _
        // Predicated region
        $region21: #{vae_forward.1} parent=11 // pred_check
          %p315 = pneg %p137
        $region22: #{vae_forward.1} parent=11 // pred_check_branch
          %317 = sbr.rel (%p315) target = $region24
        $region23: #{vae_forward.1} parent=11 // pred_region
          _
        $region24: #{vae_forward.1} parent=11 // pred_fallthru
          _
        // Predicated region
        $region25: #{vae_forward.1} parent=11 // pred_check
          %p318 = pneg %p158
        $region26: #{vae_forward.1} parent=11 // pred_check_branch
          %320 = sbr.rel (%p318) target = $region28
        $region27: #{vae_forward.1} parent=11 // pred_region
          _
        $region28: #{vae_forward.1} parent=11 // pred_fallthru
          _
        // Predicated region
        $region29: #{vae_forward.1} parent=11 // pred_check
          %p321 = pneg %p179
        $region30: #{vae_forward.1} parent=11 // pred_check_branch
          %323 = sbr.rel (%p321) target = $region32
        $region31: #{vae_forward.1} parent=11 // pred_region
          _
        $region32: #{vae_forward.1} parent=11 // pred_fallthru
          _
        // Predicated region
        $region33: #{vae_forward.1} parent=11 // pred_check
          %p324 = pneg %p200
        $region34: #{vae_forward.1} parent=11 // pred_check_branch
          %326 = sbr.rel (%p324) target = $region36
        $region35: #{vae_forward.1} parent=11 // pred_region
          _
        $region36: #{vae_forward.1} parent=11 // pred_fallthru
          _
        // Predicated region
        $region37: #{vae_forward.1} parent=11 // pred_check
          %p327 = pneg %p221
        $region38: #{vae_forward.1} parent=11 // pred_check_branch
          %329 = sbr.rel (%p327) target = $region40
        $region39: #{vae_forward.1} parent=11 // pred_region
          %331 = vsyncadd [#allocation3], 0
          %s332 = sshll.u32 %s8, 4
          %s333 = int_to_ptr.hbm [resolvable:$true] %s332
          %s334 = sshll.u32 [#allocation2], 4
          %s335 = int_to_ptr.vmem [resolvable:$true] %s334
          %340 = dma.hbm_to_vmem [thread:$0]  %s333, 2048, %s335, [#allocation3], 128, 128, 8
        $region40: #{vae_forward.1} parent=11 // pred_fallthru
          _
        // Predicated region
        $region41: #{vae_forward.1} parent=11 // pred_check
          %p341 = pneg %p242
        $region42: #{vae_forward.1} parent=11 // pred_check_branch
          %343 = sbr.rel (%p341) target = $region44
        $region43: #{vae_forward.1} parent=11 // pred_region
          _
        $region44: #{vae_forward.1} parent=11 // pred_fallthru
          _
      $region12: #{vae_forward.1} parent=5 // pred_fallthru
        _
      %p344 = scmp.lt.s32.totalorder %s22, 2
      // Predicated region
      $region45: #{vae_forward.1} parent=5 // pred_check
        %p345 = pneg %p344
      $region46: #{vae_forward.1} parent=5 // pred_check_branch
        %347 = sbr.rel (%p345) target = $region48
      $region47: #{vae_forward.1} parent=5 // pred_region
        // Predicated region
        $region49: #{vae_forward.1} parent=47 // pred_check
          %p348 = pneg %p42
        $region50: #{vae_forward.1} parent=47 // pred_check_branch
          %350 = sbr.rel (%p348) target = $region52
        $region51: #{vae_forward.1} parent=47 // pred_region
          %s351 = smul.u32 16, %s22
          %p352 = scmp.lt.s32.totalorder %s351, 31
          %s353 = scalar_select %p352, %s351, 31
          %s354 = smul.addr %s353, 8
          %s355 = scalar_lea.vmem %s0, %s354
          %s356 = smul.u32 16, %s22
        $region52: #{vae_forward.1} parent=47 // pred_fallthru
          _
        // Predicated region
        $region53: #{vae_forward.1} parent=47 // pred_check
          %p357 = pneg %p68
        $region54: #{vae_forward.1} parent=47 // pred_check_branch
          %359 = sbr.rel (%p357) target = $region56
        $region55: #{vae_forward.1} parent=47 // pred_region
          %s360 = smul.u32 16, %s22
          %p361 = scmp.lt.s32.totalorder %s360, 31
          %s362 = scalar_select %p361, %s360, 31
          %s363 = smul.addr %s362, 8
          %s364 = scalar_lea.vmem %s1, %s363
          %s365 = smul.u32 16, %s22
        $region56: #{vae_forward.1} parent=47 // pred_fallthru
          _
      $region48: #{vae_forward.1} parent=5 // pred_fallthru
        _
      %p366 = scmp.le.s32.totalorder 1, %s22
      %p367 = scmp.lt.s32.totalorder %s22, 3
      %p368 = pnand %p366, %p367
      %p369 = pneg %p368
      // Predicated region
      $region57: #{vae_forward.1} parent=5 // pred_check
        _
      $region58: #{vae_forward.1} parent=5 // pred_check_branch
        %371 = sbr.rel (%p368) target = $region60
      $region59: #{vae_forward.1} parent=5 // pred_region
        %s372 = ssub.s32 %s22, 1
        // Predicated region
        $region61: #{vae_forward.1} parent=59 // pred_check
          %p373 = pneg %p221
        $region62: #{vae_forward.1} parent=59 // pred_check_branch
          %375 = sbr.rel (%p373) target = $region64
        $region63: #{vae_forward.1} parent=59 // pred_region
          %377 = dma.done [#allocation3], 2048
        $region64: #{vae_forward.1} parent=59 // pred_fallthru
          _
        %s378 = smul.u32 16, %s27
        %p379 = scmp.lt.s32.totalorder %s378, 31
        %s380 = scalar_select %p379, %s378, 31
        %s381 = smul.addr %s380, 8
        %s382 = scalar_lea.vmem %s0, %s381
        %p383 = pneg %p48
        %p384 = pneg %p45
        %s385 = smul.u32 16, %s27
        %p386 = scmp.lt.s32.totalorder %s385, 31
        %s387 = scalar_select %p386, %s385, 31
        %s388 = smul.addr %s387, 8
        %s389 = scalar_lea.vmem %s1, %s388
        %p390 = pneg %p74
        %p391 = pneg %p71
        %p392 = pneg %p95
        %p393 = pneg %p92
        %p394 = pneg %p116
        %p395 = pneg %p113
        %p396 = pneg %p137
        %p397 = pneg %p134
        %p398 = pneg %p158
        %p399 = pneg %p155
        %p400 = pneg %p179
        %p401 = pneg %p176
        %p402 = pneg %p200
        %p403 = pneg %p197
        %p404 = pneg %p221
        %p405 = pneg %p218
        %p406 = pneg %p242
        %p407 = pneg %p239
        %p408 = pneg %p268
        %p409 = pneg %p265
        %s410 = sand.u32 %s255, 1
        %s411 = scalar_lea.sflag [#allocation4], %s410
        %s412 = sand.u32 %s255, 1
        %s413 = smul.addr %s412, 128
        %s414 = scalar_lea.vmem [#allocation5], %s413
        %p415 = pneg %p294
        %p416 = pneg %p291
        %s417 = smul.u32 16, %s27
        %p418 = scmp.lt.s32.totalorder %s417, 31
        %s419 = scalar_select %p418, %s417, 31
        %s420 = smul.addr %s419, 8
        %s421 = scalar_lea.vmem %s11, %s420
        %s422 = smul.u32 16, %s27
        %p423 = scmp.lt.s32.totalorder %s422, 31
        %s424 = scalar_select %p423, %s422, 31
        %s425 = smul.addr %s424, 8
        %s426 = scalar_lea.vmem %s0, %s425
        %s427 = smul.u32 16, %s27
        %s428 = smul.u32 16, %s27
        %p429 = scmp.lt.s32.totalorder %s428, 31
        %s430 = scalar_select %p429, %s428, 31
        %s431 = smul.addr %s430, 8
        %s432 = scalar_lea.vmem %s1, %s431
        %s433 = smul.u32 16, %s27
        %s434 = smul.u32 16, %s27
        %s435 = smul.u32 16, %s27
        %p436 = scmp.lt.s32.totalorder %s435, 31
        %s437 = scalar_select %p436, %s435, 31
        %s438 = smul.addr %s437, 8
        %s439 = scalar_lea.vmem %s11, %s438
        %s440 = smul.u32 16, %s27
        %v441 = vld [vmem:[%s426] sm:$0xff]
        %v442 = vld [vmem:[%s426 + $0x8] sm:$0xff]
        %v443 = vld [vmem:[%s426 + $0x10] sm:$0xff]
        %v444 = vld [vmem:[%s426 + $0x18] sm:$0xff]
        %v445 = vld [vmem:[%s426 + $0x20] sm:$0xff]
        %v446 = vld [vmem:[%s426 + $0x28] sm:$0xff]
        %v447 = vld [vmem:[%s426 + $0x30] sm:$0xff]
        %v448 = vld [vmem:[%s426 + $0x38] sm:$0xff]
        %v449 = vld [vmem:[%s426 + $0x40] sm:$0xff]
        %v450 = vld [vmem:[%s426 + $0x48] sm:$0xff]
        %v451 = vld [vmem:[%s426 + $0x50] sm:$0xff]
        %v452 = vld [vmem:[%s426 + $0x58] sm:$0xff]
        %v453 = vld [vmem:[%s426 + $0x60] sm:$0xff]
        %v454 = vld [vmem:[%s426 + $0x68] sm:$0xff]
        %v455 = vld [vmem:[%s426 + $0x70] sm:$0xff]
        %v456 = vld [vmem:[%s426 + $0x78] sm:$0xff]
        %v457 = vld [vmem:[%s432] sm:$0xff]
        %v458 = vld [vmem:[%s432 + $0x8] sm:$0xff]
        %v459 = vld [vmem:[%s432 + $0x10] sm:$0xff]
        %v460 = vld [vmem:[%s432 + $0x18] sm:$0xff]
        %v461 = vld [vmem:[%s432 + $0x20] sm:$0xff]
        %v462 = vld [vmem:[%s432 + $0x28] sm:$0xff]
        %v463 = vld [vmem:[%s432 + $0x30] sm:$0xff]
        %v464 = vld [vmem:[%s432 + $0x38] sm:$0xff]
        %v465 = vld [vmem:[%s432 + $0x40] sm:$0xff]
        %v466 = vld [vmem:[%s432 + $0x48] sm:$0xff]
        %v467 = vld [vmem:[%s432 + $0x50] sm:$0xff]
        %v468 = vld [vmem:[%s432 + $0x58] sm:$0xff]
        %v469 = vld [vmem:[%s432 + $0x60] sm:$0xff]
        %v470 = vld [vmem:[%s432 + $0x68] sm:$0xff]
        %v471 = vld [vmem:[%s432 + $0x70] sm:$0xff]
        %v472 = vld [vmem:[%s432 + $0x78] sm:$0xff]
        %v473 = vld [vmem:[%s2] sm:$0xff]
        %v474 = vld [vmem:[%s2 + $0x8] sm:$0xff]
        %v475 = vld [vmem:[%s2 + $0x10] sm:$0xff]
        %v476 = vld [vmem:[%s2 + $0x18] sm:$0xff]
        %v477 = vld [vmem:[%s2 + $0x20] sm:$0xff]
        %v478 = vld [vmem:[%s2 + $0x28] sm:$0xff]
        %v479 = vld [vmem:[%s2 + $0x30] sm:$0xff]
        %v480 = vld [vmem:[%s2 + $0x38] sm:$0xff]
        %v481 = vld [vmem:[%s2 + $0x40] sm:$0xff]
        %v482 = vld [vmem:[%s2 + $0x48] sm:$0xff]
        %v483 = vld [vmem:[%s2 + $0x50] sm:$0xff]
        %v484 = vld [vmem:[%s2 + $0x58] sm:$0xff]
        %v485 = vld [vmem:[%s2 + $0x60] sm:$0xff]
        %v486 = vld [vmem:[%s2 + $0x68] sm:$0xff]
        %v487 = vld [vmem:[%s2 + $0x70] sm:$0xff]
        %v488 = vld [vmem:[%s2 + $0x78] sm:$0xff]
        %v489 = vld [vmem:[%s3] sm:$0x1]
        %v491 = vperm.slane %v489, 0
        %493 = vmatpush.msra.mxu0 %v488
        %494 = vmatpush.msra.mxu0 %v487
        %495 = vmatpush.msra.mxu0 %v486
        %496 = vmatpush.msra.mxu0 %v485
        %497 = vmatpush.msra.mxu0 %v484
        %498 = vmatpush.msra.mxu0 %v483
        %499 = vmatpush.msra.mxu0 %v482
        %500 = vmatpush.msra.mxu0 %v481
        %501 = vmatpush.msra.mxu0 %v480
        %502 = vmatpush.msra.mxu0 %v479
        %503 = vmatpush.msra.mxu0 %v478
        %504 = vmatpush.msra.mxu0 %v477
        %505 = vmatpush.msra.mxu0 %v476
        %506 = vmatpush.msra.mxu0 %v475
        %507 = vmatpush.msra.mxu0 %v474
        %508 = vmatpush.msra.mxu0 %v473
        %509 = vmatmul.f32.gmra.mxu0 %v441
        %v510 = vpop.f32.mrf.mxu0
        %v511 = vadd.f32 %v491, %v510
        %512 = vmatmul.f32.gmra.mxu0 %v442
        %v513 = vpop.f32.mrf.mxu0
        %v514 = vadd.f32 %v491, %v513
        %515 = vmatmul.f32.gmra.mxu0 %v443
        %v516 = vpop.f32.mrf.mxu0
        %v517 = vadd.f32 %v491, %v516
        %518 = vmatmul.f32.gmra.mxu0 %v444
        %v519 = vpop.f32.mrf.mxu0
        %v520 = vadd.f32 %v491, %v519
        %521 = vmatmul.f32.gmra.mxu0 %v445
        %v522 = vpop.f32.mrf.mxu0
        %v523 = vadd.f32 %v491, %v522
        %524 = vmatmul.f32.gmra.mxu0 %v446
        %v525 = vpop.f32.mrf.mxu0
        %v526 = vadd.f32 %v491, %v525
        %527 = vmatmul.f32.gmra.mxu0 %v447
        %v528 = vpop.f32.mrf.mxu0
        %v529 = vadd.f32 %v491, %v528
        %530 = vmatmul.f32.gmra.mxu0 %v448
        %v531 = vpop.f32.mrf.mxu0
        %v532 = vadd.f32 %v491, %v531
        %533 = vmatmul.f32.gmra.mxu0 %v449
        %v534 = vpop.f32.mrf.mxu0
        %v535 = vadd.f32 %v491, %v534
        %536 = vmatmul.f32.gmra.mxu0 %v450
        %v537 = vpop.f32.mrf.mxu0
        %v538 = vadd.f32 %v491, %v537
        %539 = vmatmul.f32.gmra.mxu0 %v451
        %v540 = vpop.f32.mrf.mxu0
        %v541 = vadd.f32 %v491, %v540
        %542 = vmatmul.f32.gmra.mxu0 %v452
        %v543 = vpop.f32.mrf.mxu0
        %v544 = vadd.f32 %v491, %v543
        %545 = vmatmul.f32.gmra.mxu0 %v453
        %v546 = vpop.f32.mrf.mxu0
        %v547 = vadd.f32 %v491, %v546
        %548 = vmatmul.f32.gmra.mxu0 %v454
        %v549 = vpop.f32.mrf.mxu0
        %v550 = vadd.f32 %v491, %v549
        %551 = vmatmul.f32.gmra.mxu0 %v455
        %v552 = vpop.f32.mrf.mxu0
        %v553 = vadd.f32 %v491, %v552
        %554 = vmatmul.f32.gmra.mxu0 %v456
        %v555 = vpop.f32.mrf.mxu0
        %v556 = vadd.f32 %v491, %v555
        %557 = vdwg.mxu0
        %v558 = vmul.f32 %v511, 0.5
        %v559 = vmul.f32 %v514, 0.5
        %v560 = vmul.f32 %v517, 0.5
        %v561 = vmul.f32 %v520, 0.5
        %v562 = vmul.f32 %v523, 0.5
        %v563 = vmul.f32 %v526, 0.5
        %v564 = vmul.f32 %v529, 0.5
        %v565 = vmul.f32 %v532, 0.5
        %v566 = vmul.f32 %v535, 0.5
        %v567 = vmul.f32 %v538, 0.5
        %v568 = vmul.f32 %v541, 0.5
        %v569 = vmul.f32 %v544, 0.5
        %v570 = vmul.f32 %v547, 0.5
        %v571 = vmul.f32 %v550, 0.5
        %v572 = vmul.f32 %v553, 0.5
        %v573 = vmul.f32 %v556, 0.5
        %v574 = vtanh.pop %v558
        %v575 = vtanh.pop %v559
        %v576 = vtanh.pop %v560
        %v577 = vtanh.pop %v561
        %v578 = vtanh.pop %v562
        %v579 = vtanh.pop %v563
        %v580 = vtanh.pop %v564
        %v581 = vtanh.pop %v565
        %v582 = vtanh.pop %v566
        %v583 = vtanh.pop %v567
        %v584 = vtanh.pop %v568
        %v585 = vtanh.pop %v569
        %v586 = vtanh.pop %v570
        %v587 = vtanh.pop %v571
        %v588 = vtanh.pop %v572
        %v589 = vtanh.pop %v573
        %v590 = vmul.f32 %v574, 0.5
        %v591 = vmul.f32 %v575, 0.5
        %v592 = vmul.f32 %v576, 0.5
        %v593 = vmul.f32 %v577, 0.5
        %v594 = vmul.f32 %v578, 0.5
        %v595 = vmul.f32 %v579, 0.5
        %v596 = vmul.f32 %v580, 0.5
        %v597 = vmul.f32 %v581, 0.5
        %v598 = vmul.f32 %v582, 0.5
        %v599 = vmul.f32 %v583, 0.5
        %v600 = vmul.f32 %v584, 0.5
        %v601 = vmul.f32 %v585, 0.5
        %v602 = vmul.f32 %v586, 0.5
        %v603 = vmul.f32 %v587, 0.5
        %v604 = vmul.f32 %v588, 0.5
        %v605 = vmul.f32 %v589, 0.5
        %v606 = vadd.f32 %v590, 0.5
        %v607 = vadd.f32 %v591, 0.5
        %v608 = vadd.f32 %v592, 0.5
        %v609 = vadd.f32 %v593, 0.5
        %v610 = vadd.f32 %v594, 0.5
        %v611 = vadd.f32 %v595, 0.5
        %v612 = vadd.f32 %v596, 0.5
        %v613 = vadd.f32 %v597, 0.5
        %v614 = vadd.f32 %v598, 0.5
        %v615 = vadd.f32 %v599, 0.5
        %v616 = vadd.f32 %v600, 0.5
        %v617 = vadd.f32 %v601, 0.5
        %v618 = vadd.f32 %v602, 0.5
        %v619 = vadd.f32 %v603, 0.5
        %v620 = vadd.f32 %v604, 0.5
        %v621 = vadd.f32 %v605, 0.5
        %v622 = vld [vmem:[%s4] sm:$0xff]
        %v623 = vld [vmem:[%s4 + $0x8] sm:$0xff]
        %v624 = vld [vmem:[%s4 + $0x10] sm:$0xff]
        %v625 = vld [vmem:[%s4 + $0x18] sm:$0xff]
        %v626 = vld [vmem:[%s4 + $0x20] sm:$0xff]
        %v627 = vld [vmem:[%s4 + $0x28] sm:$0xff]
        %v628 = vld [vmem:[%s4 + $0x30] sm:$0xff]
        %v629 = vld [vmem:[%s4 + $0x38] sm:$0xff]
        %v630 = vld [vmem:[%s4 + $0x40] sm:$0xff]
        %v631 = vld [vmem:[%s4 + $0x48] sm:$0xff]
        %v632 = vld [vmem:[%s4 + $0x50] sm:$0xff]
        %v633 = vld [vmem:[%s4 + $0x58] sm:$0xff]
        %v634 = vld [vmem:[%s4 + $0x60] sm:$0xff]
        %v635 = vld [vmem:[%s4 + $0x68] sm:$0xff]
        %v636 = vld [vmem:[%s4 + $0x70] sm:$0xff]
        %v637 = vld [vmem:[%s4 + $0x78] sm:$0xff]
        %v638 = vld [vmem:[%s4 + $0x80] sm:$0xff]
        %v639 = vld [vmem:[%s4 + $0x88] sm:$0xff]
        %v640 = vld [vmem:[%s4 + $0x90] sm:$0xff]
        %v641 = vld [vmem:[%s4 + $0x98] sm:$0xff]
        %v642 = vld [vmem:[%s4 + $0xa0] sm:$0xff]
        %v643 = vld [vmem:[%s4 + $0xa8] sm:$0xff]
        %v644 = vld [vmem:[%s4 + $0xb0] sm:$0xff]
        %v645 = vld [vmem:[%s4 + $0xb8] sm:$0xff]
        %v646 = vld [vmem:[%s4 + $0xc0] sm:$0xff]
        %v647 = vld [vmem:[%s4 + $0xc8] sm:$0xff]
        %v648 = vld [vmem:[%s4 + $0xd0] sm:$0xff]
        %v649 = vld [vmem:[%s4 + $0xd8] sm:$0xff]
        %v650 = vld [vmem:[%s4 + $0xe0] sm:$0xff]
        %v651 = vld [vmem:[%s4 + $0xe8] sm:$0xff]
        %v652 = vld [vmem:[%s4 + $0xf0] sm:$0xff]
        %v653 = vld [vmem:[%s4 + $0xf8] sm:$0xff]
        %v654 = vld [vmem:[%s5] sm:$0x3]
        %v656 = vperm.slane %v654, 0
        %v657 = vperm.slane %v654, 1
        %660 = vmatpush.msra.mxu0 %v652
        %661 = vmatpush.msra.mxu0 %v650
        %662 = vmatpush.msra.mxu0 %v648
        %663 = vmatpush.msra.mxu0 %v646
        %664 = vmatpush.msra.mxu0 %v644
        %665 = vmatpush.msra.mxu0 %v642
        %666 = vmatpush.msra.mxu0 %v640
        %667 = vmatpush.msra.mxu0 %v638
        %668 = vmatpush.msra.mxu0 %v636
        %669 = vmatpush.msra.mxu0 %v634
        %670 = vmatpush.msra.mxu0 %v632
        %671 = vmatpush.msra.mxu0 %v630
        %672 = vmatpush.msra.mxu0 %v628
        %673 = vmatpush.msra.mxu0 %v626
        %674 = vmatpush.msra.mxu0 %v624
        %675 = vmatpush.msra.mxu0 %v622
        %676 = vmatmul.f32.gmra.mxu0 %v606
        %v677 = vpop.f32.mrf.mxu0
        %v678 = vadd.f32 %v656, %v677
        %679 = vmatmul.f32.gmra.mxu0 %v607
        %v680 = vpop.f32.mrf.mxu0
        %v681 = vadd.f32 %v656, %v680
        %682 = vmatmul.f32.gmra.mxu0 %v608
        %v683 = vpop.f32.mrf.mxu0
        %v684 = vadd.f32 %v656, %v683
        %685 = vmatmul.f32.gmra.mxu0 %v609
        %v686 = vpop.f32.mrf.mxu0
        %v687 = vadd.f32 %v656, %v686
        %688 = vmatmul.f32.gmra.mxu0 %v610
        %v689 = vpop.f32.mrf.mxu0
        %v690 = vadd.f32 %v656, %v689
        %691 = vmatmul.f32.gmra.mxu0 %v611
        %v692 = vpop.f32.mrf.mxu0
        %v693 = vadd.f32 %v656, %v692
        %694 = vmatmul.f32.gmra.mxu0 %v612
        %v695 = vpop.f32.mrf.mxu0
        %v696 = vadd.f32 %v656, %v695
        %697 = vmatmul.f32.gmra.mxu0 %v613
        %v698 = vpop.f32.mrf.mxu0
        %v699 = vadd.f32 %v656, %v698
        %700 = vmatmul.f32.gmra.mxu0 %v614
        %v701 = vpop.f32.mrf.mxu0
        %v702 = vadd.f32 %v656, %v701
        %703 = vmatmul.f32.gmra.mxu0 %v615
        %v704 = vpop.f32.mrf.mxu0
        %v705 = vadd.f32 %v656, %v704
        %706 = vmatmul.f32.gmra.mxu0 %v616
        %v707 = vpop.f32.mrf.mxu0
        %v708 = vadd.f32 %v656, %v707
        %709 = vmatmul.f32.gmra.mxu0 %v617
        %v710 = vpop.f32.mrf.mxu0
        %v711 = vadd.f32 %v656, %v710
        %712 = vmatmul.f32.gmra.mxu0 %v618
        %v713 = vpop.f32.mrf.mxu0
        %v714 = vadd.f32 %v656, %v713
        %715 = vmatmul.f32.gmra.mxu0 %v619
        %v716 = vpop.f32.mrf.mxu0
        %v717 = vadd.f32 %v656, %v716
        %718 = vmatmul.f32.gmra.mxu0 %v620
        %v719 = vpop.f32.mrf.mxu0
        %v720 = vadd.f32 %v656, %v719
        %721 = vmatmul.f32.gmra.mxu0 %v621
        %v722 = vpop.f32.mrf.mxu0
        %v723 = vadd.f32 %v656, %v722
        %724 = vdwg.mxu0
        %725 = vmatpush.msra.mxu0 %v653
        %726 = vmatpush.msra.mxu0 %v651
        %727 = vmatpush.msra.mxu0 %v649
        %728 = vmatpush.msra.mxu0 %v647
        %729 = vmatpush.msra.mxu0 %v645
        %730 = vmatpush.msra.mxu0 %v643
        %731 = vmatpush.msra.mxu0 %v641
        %732 = vmatpush.msra.mxu0 %v639
        %733 = vmatpush.msra.mxu0 %v637
        %734 = vmatpush.msra.mxu0 %v635
        %735 = vmatpush.msra.mxu0 %v633
        %736 = vmatpush.msra.mxu0 %v631
        %737 = vmatpush.msra.mxu0 %v629
        %738 = vmatpush.msra.mxu0 %v627
        %739 = vmatpush.msra.mxu0 %v625
        %740 = vmatpush.msra.mxu0 %v623
        %741 = vmatmul.f32.gmra.mxu0 %v606
        %v742 = vpop.f32.mrf.mxu0
        %v743 = vadd.f32 %v657, %v742
        %744 = vmatmul.f32.gmra.mxu0 %v607
        %v745 = vpop.f32.mrf.mxu0
        %v746 = vadd.f32 %v657, %v745
        %747 = vmatmul.f32.gmra.mxu0 %v608
        %v748 = vpop.f32.mrf.mxu0
        %v749 = vadd.f32 %v657, %v748
        %750 = vmatmul.f32.gmra.mxu0 %v609
        %v751 = vpop.f32.mrf.mxu0
        %v752 = vadd.f32 %v657, %v751
        %753 = vmatmul.f32.gmra.mxu0 %v610
        %v754 = vpop.f32.mrf.mxu0
        %v755 = vadd.f32 %v657, %v754
        %756 = vmatmul.f32.gmra.mxu0 %v611
        %v757 = vpop.f32.mrf.mxu0
        %v758 = vadd.f32 %v657, %v757
        %759 = vmatmul.f32.gmra.mxu0 %v612
        %v760 = vpop.f32.mrf.mxu0
        %v761 = vadd.f32 %v657, %v760
        %762 = vmatmul.f32.gmra.mxu0 %v613
        %v763 = vpop.f32.mrf.mxu0
        %v764 = vadd.f32 %v657, %v763
        %765 = vmatmul.f32.gmra.mxu0 %v614
        %v766 = vpop.f32.mrf.mxu0
        %v767 = vadd.f32 %v657, %v766
        %768 = vmatmul.f32.gmra.mxu0 %v615
        %v769 = vpop.f32.mrf.mxu0
        %v770 = vadd.f32 %v657, %v769
        %771 = vmatmul.f32.gmra.mxu0 %v616
        %v772 = vpop.f32.mrf.mxu0
        %v773 = vadd.f32 %v657, %v772
        %774 = vmatmul.f32.gmra.mxu0 %v617
        %v775 = vpop.f32.mrf.mxu0
        %v776 = vadd.f32 %v657, %v775
        %777 = vmatmul.f32.gmra.mxu0 %v618
        %v778 = vpop.f32.mrf.mxu0
        %v779 = vadd.f32 %v657, %v778
        %780 = vmatmul.f32.gmra.mxu0 %v619
        %v781 = vpop.f32.mrf.mxu0
        %v782 = vadd.f32 %v657, %v781
        %783 = vmatmul.f32.gmra.mxu0 %v620
        %v784 = vpop.f32.mrf.mxu0
        %v785 = vadd.f32 %v657, %v784
        %786 = vmatmul.f32.gmra.mxu0 %v621
        %v787 = vpop.f32.mrf.mxu0
        %v788 = vadd.f32 %v657, %v787
        %789 = vdwg.mxu0
        %v790 = vmul.f32 %v743, 0.5
        %v791 = vmul.f32 %v746, 0.5
        %v792 = vmul.f32 %v749, 0.5
        %v793 = vmul.f32 %v752, 0.5
        %v794 = vmul.f32 %v755, 0.5
        %v795 = vmul.f32 %v758, 0.5
        %v796 = vmul.f32 %v761, 0.5
        %v797 = vmul.f32 %v764, 0.5
        %v798 = vmul.f32 %v767, 0.5
        %v799 = vmul.f32 %v770, 0.5
        %v800 = vmul.f32 %v773, 0.5
        %v801 = vmul.f32 %v776, 0.5
        %v802 = vmul.f32 %v779, 0.5
        %v803 = vmul.f32 %v782, 0.5
        %v804 = vmul.f32 %v785, 0.5
        %v805 = vmul.f32 %v788, 0.5
        %v806 = vmul.f32 %v790, 1.442695
        %v807 = vpow.pop %v806
        %v808 = vmul.f32 %v791, 1.442695
        %v809 = vpow.pop %v808
        %v810 = vmul.f32 %v792, 1.442695
        %v811 = vpow.pop %v810
        %v812 = vmul.f32 %v793, 1.442695
        %v813 = vpow.pop %v812
        %v814 = vmul.f32 %v794, 1.442695
        %v815 = vpow.pop %v814
        %v816 = vmul.f32 %v795, 1.442695
        %v817 = vpow.pop %v816
        %v818 = vmul.f32 %v796, 1.442695
        %v819 = vpow.pop %v818
        %v820 = vmul.f32 %v797, 1.442695
        %v821 = vpow.pop %v820
        %v822 = vmul.f32 %v798, 1.442695
        %v823 = vpow.pop %v822
        %v824 = vmul.f32 %v799, 1.442695
        %v825 = vpow.pop %v824
        %v826 = vmul.f32 %v800, 1.442695
        %v827 = vpow.pop %v826
        %v828 = vmul.f32 %v801, 1.442695
        %v829 = vpow.pop %v828
        %v830 = vmul.f32 %v802, 1.442695
        %v831 = vpow.pop %v830
        %v832 = vmul.f32 %v803, 1.442695
        %v833 = vpow.pop %v832
        %v834 = vmul.f32 %v804, 1.442695
        %v835 = vpow.pop %v834
        %v836 = vmul.f32 %v805, 1.442695
        %v837 = vpow.pop %v836
        %v838 = vmul.f32 %v807, %v457
        %v839 = vmul.f32 %v809, %v458
        %v840 = vmul.f32 %v811, %v459
        %v841 = vmul.f32 %v813, %v460
        %v842 = vmul.f32 %v815, %v461
        %v843 = vmul.f32 %v817, %v462
        %v844 = vmul.f32 %v819, %v463
        %v845 = vmul.f32 %v821, %v464
        %v846 = vmul.f32 %v823, %v465
        %v847 = vmul.f32 %v825, %v466
        %v848 = vmul.f32 %v827, %v467
        %v849 = vmul.f32 %v829, %v468
        %v850 = vmul.f32 %v831, %v469
        %v851 = vmul.f32 %v833, %v470
        %v852 = vmul.f32 %v835, %v471
        %v853 = vmul.f32 %v837, %v472
        %v854 = vadd.f32 %v678, %v838
        %v855 = vadd.f32 %v681, %v839
        %v856 = vadd.f32 %v684, %v840
        %v857 = vadd.f32 %v687, %v841
        %v858 = vadd.f32 %v690, %v842
        %v859 = vadd.f32 %v693, %v843
        %v860 = vadd.f32 %v696, %v844
        %v861 = vadd.f32 %v699, %v845
        %v862 = vadd.f32 %v702, %v846
        %v863 = vadd.f32 %v705, %v847
        %v864 = vadd.f32 %v708, %v848
        %v865 = vadd.f32 %v711, %v849
        %v866 = vadd.f32 %v714, %v850
        %v867 = vadd.f32 %v717, %v851
        %v868 = vadd.f32 %v720, %v852
        %v869 = vadd.f32 %v723, %v853
        %v870 = vmul.f32 %v807, %v807
        %v871 = vmul.f32 %v809, %v809
        %v872 = vmul.f32 %v811, %v811
        %v873 = vmul.f32 %v813, %v813
        %v874 = vmul.f32 %v815, %v815
        %v875 = vmul.f32 %v817, %v817
        %v876 = vmul.f32 %v819, %v819
        %v877 = vmul.f32 %v821, %v821
        %v878 = vmul.f32 %v823, %v823
        %v879 = vmul.f32 %v825, %v825
        %v880 = vmul.f32 %v827, %v827
        %v881 = vmul.f32 %v829, %v829
        %v882 = vmul.f32 %v831, %v831
        %v883 = vmul.f32 %v833, %v833
        %v884 = vmul.f32 %v835, %v835
        %v885 = vmul.f32 %v837, %v837
        %v886 = vld [vmem:[%s6] sm:$0xff]
        %v887 = vld [vmem:[%s6 + $0x8] sm:$0xff]
        %v888 = vld [vmem:[%s6 + $0x10] sm:$0xff]
        %v889 = vld [vmem:[%s6 + $0x18] sm:$0xff]
        %v890 = vld [vmem:[%s6 + $0x20] sm:$0xff]
        %v891 = vld [vmem:[%s6 + $0x28] sm:$0xff]
        %v892 = vld [vmem:[%s6 + $0x30] sm:$0xff]
        %v893 = vld [vmem:[%s6 + $0x38] sm:$0xff]
        %v894 = vld [vmem:[%s6 + $0x40] sm:$0xff]
        %v895 = vld [vmem:[%s6 + $0x48] sm:$0xff]
        %v896 = vld [vmem:[%s6 + $0x50] sm:$0xff]
        %v897 = vld [vmem:[%s6 + $0x58] sm:$0xff]
        %v898 = vld [vmem:[%s6 + $0x60] sm:$0xff]
        %v899 = vld [vmem:[%s6 + $0x68] sm:$0xff]
        %v900 = vld [vmem:[%s6 + $0x70] sm:$0xff]
        %v901 = vld [vmem:[%s6 + $0x78] sm:$0xff]
        %v902 = vld [vmem:[%s7] sm:$0x1]
        %v904 = vperm.slane %v902, 0
        %906 = vmatpush.msra.mxu0 %v901
        %907 = vmatpush.msra.mxu0 %v900
        %908 = vmatpush.msra.mxu0 %v899
        %909 = vmatpush.msra.mxu0 %v898
        %910 = vmatpush.msra.mxu0 %v897
        %911 = vmatpush.msra.mxu0 %v896
        %912 = vmatpush.msra.mxu0 %v895
        %913 = vmatpush.msra.mxu0 %v894
        %914 = vmatpush.msra.mxu0 %v893
        %915 = vmatpush.msra.mxu0 %v892
        %916 = vmatpush.msra.mxu0 %v891
        %917 = vmatpush.msra.mxu0 %v890
        %918 = vmatpush.msra.mxu0 %v889
        %919 = vmatpush.msra.mxu0 %v888
        %920 = vmatpush.msra.mxu0 %v887
        %921 = vmatpush.msra.mxu0 %v886
        %922 = vmatmul.f32.gmra.mxu0 %v854
        %v923 = vpop.f32.mrf.mxu0
        %v924 = vadd.f32 %v904, %v923
        %925 = vmatmul.f32.gmra.mxu0 %v855
        %v926 = vpop.f32.mrf.mxu0
        %v927 = vadd.f32 %v904, %v926
        %928 = vmatmul.f32.gmra.mxu0 %v856
        %v929 = vpop.f32.mrf.mxu0
        %v930 = vadd.f32 %v904, %v929
        %931 = vmatmul.f32.gmra.mxu0 %v857
        %v932 = vpop.f32.mrf.mxu0
        %v933 = vadd.f32 %v904, %v932
        %934 = vmatmul.f32.gmra.mxu0 %v858
        %v935 = vpop.f32.mrf.mxu0
        %v936 = vadd.f32 %v904, %v935
        %937 = vmatmul.f32.gmra.mxu0 %v859
        %v938 = vpop.f32.mrf.mxu0
        %v939 = vadd.f32 %v904, %v938
        %940 = vmatmul.f32.gmra.mxu0 %v860
        %v941 = vpop.f32.mrf.mxu0
        %v942 = vadd.f32 %v904, %v941
        %943 = vmatmul.f32.gmra.mxu0 %v861
        %v944 = vpop.f32.mrf.mxu0
        %v945 = vadd.f32 %v904, %v944
        %946 = vmatmul.f32.gmra.mxu0 %v862
        %v947 = vpop.f32.mrf.mxu0
        %v948 = vadd.f32 %v904, %v947
        %949 = vmatmul.f32.gmra.mxu0 %v863
        %v950 = vpop.f32.mrf.mxu0
        %v951 = vadd.f32 %v904, %v950
        %952 = vmatmul.f32.gmra.mxu0 %v864
        %v953 = vpop.f32.mrf.mxu0
        %v954 = vadd.f32 %v904, %v953
        %955 = vmatmul.f32.gmra.mxu0 %v865
        %v956 = vpop.f32.mrf.mxu0
        %v957 = vadd.f32 %v904, %v956
        %958 = vmatmul.f32.gmra.mxu0 %v866
        %v959 = vpop.f32.mrf.mxu0
        %v960 = vadd.f32 %v904, %v959
        %961 = vmatmul.f32.gmra.mxu0 %v867
        %v962 = vpop.f32.mrf.mxu0
        %v963 = vadd.f32 %v904, %v962
        %964 = vmatmul.f32.gmra.mxu0 %v868
        %v965 = vpop.f32.mrf.mxu0
        %v966 = vadd.f32 %v904, %v965
        %967 = vmatmul.f32.gmra.mxu0 %v869
        %v968 = vpop.f32.mrf.mxu0
        %v969 = vadd.f32 %v904, %v968
        %970 = vdwg.mxu0
        %v971 = vmul.f32 %v924, 0.5
        %v972 = vmul.f32 %v927, 0.5
        %v973 = vmul.f32 %v930, 0.5
        %v974 = vmul.f32 %v933, 0.5
        %v975 = vmul.f32 %v936, 0.5
        %v976 = vmul.f32 %v939, 0.5
        %v977 = vmul.f32 %v942, 0.5
        %v978 = vmul.f32 %v945, 0.5
        %v979 = vmul.f32 %v948, 0.5
        %v980 = vmul.f32 %v951, 0.5
        %v981 = vmul.f32 %v954, 0.5
        %v982 = vmul.f32 %v957, 0.5
        %v983 = vmul.f32 %v960, 0.5
        %v984 = vmul.f32 %v963, 0.5
        %v985 = vmul.f32 %v966, 0.5
        %v986 = vmul.f32 %v969, 0.5
        %v987 = vtanh.pop %v971
        %v988 = vtanh.pop %v972
        %v989 = vtanh.pop %v973
        %v990 = vtanh.pop %v974
        %v991 = vtanh.pop %v975
        %v992 = vtanh.pop %v976
        %v993 = vtanh.pop %v977
        %v994 = vtanh.pop %v978
        %v995 = vtanh.pop %v979
        %v996 = vtanh.pop %v980
        %v997 = vtanh.pop %v981
        %v998 = vtanh.pop %v982
        %v999 = vtanh.pop %v983
        %v1000 = vtanh.pop %v984
        %v1001 = vtanh.pop %v985
        %v1002 = vtanh.pop %v986
        %v1003 = vmul.f32 %v987, 0.5
        %v1004 = vmul.f32 %v988, 0.5
        %v1005 = vmul.f32 %v989, 0.5
        %v1006 = vmul.f32 %v990, 0.5
        %v1007 = vmul.f32 %v991, 0.5
        %v1008 = vmul.f32 %v992, 0.5
        %v1009 = vmul.f32 %v993, 0.5
        %v1010 = vmul.f32 %v994, 0.5
        %v1011 = vmul.f32 %v995, 0.5
        %v1012 = vmul.f32 %v996, 0.5
        %v1013 = vmul.f32 %v997, 0.5
        %v1014 = vmul.f32 %v998, 0.5
        %v1015 = vmul.f32 %v999, 0.5
        %v1016 = vmul.f32 %v1000, 0.5
        %v1017 = vmul.f32 %v1001, 0.5
        %v1018 = vmul.f32 %v1002, 0.5
        %v1019 = vadd.f32 %v1003, 0.5
        %v1020 = vadd.f32 %v1004, 0.5
        %v1021 = vadd.f32 %v1005, 0.5
        %v1022 = vadd.f32 %v1006, 0.5
        %v1023 = vadd.f32 %v1007, 0.5
        %v1024 = vadd.f32 %v1008, 0.5
        %v1025 = vadd.f32 %v1009, 0.5
        %v1026 = vadd.f32 %v1010, 0.5
        %v1027 = vadd.f32 %v1011, 0.5
        %v1028 = vadd.f32 %v1012, 0.5
        %v1029 = vadd.f32 %v1013, 0.5
        %v1030 = vadd.f32 %v1014, 0.5
        %v1031 = vadd.f32 %v1015, 0.5
        %v1032 = vadd.f32 %v1016, 0.5
        %v1033 = vadd.f32 %v1017, 0.5
        %v1034 = vadd.f32 %v1018, 0.5
        %v1035 = vld [vmem:[#allocation2] sm:$0xff]
        %v1036 = vld [vmem:[#allocation2 + $0x8] sm:$0xff]
        %v1037 = vld [vmem:[#allocation2 + $0x10] sm:$0xff]
        %v1038 = vld [vmem:[#allocation2 + $0x18] sm:$0xff]
        %v1039 = vld [vmem:[#allocation2 + $0x20] sm:$0xff]
        %v1040 = vld [vmem:[#allocation2 + $0x28] sm:$0xff]
        %v1041 = vld [vmem:[#allocation2 + $0x30] sm:$0xff]
        %v1042 = vld [vmem:[#allocation2 + $0x38] sm:$0xff]
        %v1043 = vld [vmem:[#allocation2 + $0x40] sm:$0xff]
        %v1044 = vld [vmem:[#allocation2 + $0x48] sm:$0xff]
        %v1045 = vld [vmem:[#allocation2 + $0x50] sm:$0xff]
        %v1046 = vld [vmem:[#allocation2 + $0x58] sm:$0xff]
        %v1047 = vld [vmem:[#allocation2 + $0x60] sm:$0xff]
        %v1048 = vld [vmem:[#allocation2 + $0x68] sm:$0xff]
        %v1049 = vld [vmem:[#allocation2 + $0x70] sm:$0xff]
        %v1050 = vld [vmem:[#allocation2 + $0x78] sm:$0xff]
        %v1051 = vld [vmem:[%s9] sm:$0x1]
        %v1053 = vperm.slane %v1051, 0
        %1055 = vmatpush.msra.mxu0 %v1050
        %1056 = vmatpush.msra.mxu0 %v1049
        %1057 = vmatpush.msra.mxu0 %v1048
        %1058 = vmatpush.msra.mxu0 %v1047
        %1059 = vmatpush.msra.mxu0 %v1046
        %1060 = vmatpush.msra.mxu0 %v1045
        %1061 = vmatpush.msra.mxu0 %v1044
        %1062 = vmatpush.msra.mxu0 %v1043
        %1063 = vmatpush.msra.mxu0 %v1042
        %1064 = vmatpush.msra.mxu0 %v1041
        %1065 = vmatpush.msra.mxu0 %v1040
        %1066 = vmatpush.msra.mxu0 %v1039
        %1067 = vmatpush.msra.mxu0 %v1038
        %1068 = vmatpush.msra.mxu0 %v1037
        %1069 = vmatpush.msra.mxu0 %v1036
        %1070 = vmatpush.msra.mxu0 %v1035
        %1071 = vmatmul.f32.gmra.mxu0 %v1019
        %v1072 = vpop.f32.mrf.mxu0
        %v1073 = vadd.f32 %v1053, %v1072
        %1074 = vmatmul.f32.gmra.mxu0 %v1020
        %v1075 = vpop.f32.mrf.mxu0
        %v1076 = vadd.f32 %v1053, %v1075
        %1077 = vmatmul.f32.gmra.mxu0 %v1021
        %v1078 = vpop.f32.mrf.mxu0
        %v1079 = vadd.f32 %v1053, %v1078
        %1080 = vmatmul.f32.gmra.mxu0 %v1022
        %v1081 = vpop.f32.mrf.mxu0
        %v1082 = vadd.f32 %v1053, %v1081
        %1083 = vmatmul.f32.gmra.mxu0 %v1023
        %v1084 = vpop.f32.mrf.mxu0
        %v1085 = vadd.f32 %v1053, %v1084
        %1086 = vmatmul.f32.gmra.mxu0 %v1024
        %v1087 = vpop.f32.mrf.mxu0
        %v1088 = vadd.f32 %v1053, %v1087
        %1089 = vmatmul.f32.gmra.mxu0 %v1025
        %v1090 = vpop.f32.mrf.mxu0
        %v1091 = vadd.f32 %v1053, %v1090
        %1092 = vmatmul.f32.gmra.mxu0 %v1026
        %v1093 = vpop.f32.mrf.mxu0
        %v1094 = vadd.f32 %v1053, %v1093
        %1095 = vmatmul.f32.gmra.mxu0 %v1027
        %v1096 = vpop.f32.mrf.mxu0
        %v1097 = vadd.f32 %v1053, %v1096
        %1098 = vmatmul.f32.gmra.mxu0 %v1028
        %v1099 = vpop.f32.mrf.mxu0
        %v1100 = vadd.f32 %v1053, %v1099
        %1101 = vmatmul.f32.gmra.mxu0 %v1029
        %v1102 = vpop.f32.mrf.mxu0
        %v1103 = vadd.f32 %v1053, %v1102
        %1104 = vmatmul.f32.gmra.mxu0 %v1030
        %v1105 = vpop.f32.mrf.mxu0
        %v1106 = vadd.f32 %v1053, %v1105
        %1107 = vmatmul.f32.gmra.mxu0 %v1031
        %v1108 = vpop.f32.mrf.mxu0
        %v1109 = vadd.f32 %v1053, %v1108
        %1110 = vmatmul.f32.gmra.mxu0 %v1032
        %v1111 = vpop.f32.mrf.mxu0
        %v1112 = vadd.f32 %v1053, %v1111
        %1113 = vmatmul.f32.gmra.mxu0 %v1033
        %v1114 = vpop.f32.mrf.mxu0
        %v1115 = vadd.f32 %v1053, %v1114
        %1116 = vmatmul.f32.gmra.mxu0 %v1034
        %v1117 = vpop.f32.mrf.mxu0
        %v1118 = vadd.f32 %v1053, %v1117
        %1119 = vdwg.mxu0
        %v1120 = vmul.f32 %v1073, 0.5
        %v1121 = vmul.f32 %v1076, 0.5
        %v1122 = vmul.f32 %v1079, 0.5
        %v1123 = vmul.f32 %v1082, 0.5
        %v1124 = vmul.f32 %v1085, 0.5
        %v1125 = vmul.f32 %v1088, 0.5
        %v1126 = vmul.f32 %v1091, 0.5
        %v1127 = vmul.f32 %v1094, 0.5
        %v1128 = vmul.f32 %v1097, 0.5
        %v1129 = vmul.f32 %v1100, 0.5
        %v1130 = vmul.f32 %v1103, 0.5
        %v1131 = vmul.f32 %v1106, 0.5
        %v1132 = vmul.f32 %v1109, 0.5
        %v1133 = vmul.f32 %v1112, 0.5
        %v1134 = vmul.f32 %v1115, 0.5
        %v1135 = vmul.f32 %v1118, 0.5
        %v1136 = vtanh.pop %v1120
        %v1137 = vtanh.pop %v1121
        %v1138 = vtanh.pop %v1122
        %v1139 = vtanh.pop %v1123
        %v1140 = vtanh.pop %v1124
        %v1141 = vtanh.pop %v1125
        %v1142 = vtanh.pop %v1126
        %v1143 = vtanh.pop %v1127
        %v1144 = vtanh.pop %v1128
        %v1145 = vtanh.pop %v1129
        %v1146 = vtanh.pop %v1130
        %v1147 = vtanh.pop %v1131
        %v1148 = vtanh.pop %v1132
        %v1149 = vtanh.pop %v1133
        %v1150 = vtanh.pop %v1134
        %v1151 = vtanh.pop %v1135
        %v1152 = vmul.f32 %v1136, 0.5
        %v1153 = vmul.f32 %v1137, 0.5
        %v1154 = vmul.f32 %v1138, 0.5
        %v1155 = vmul.f32 %v1139, 0.5
        %v1156 = vmul.f32 %v1140, 0.5
        %v1157 = vmul.f32 %v1141, 0.5
        %v1158 = vmul.f32 %v1142, 0.5
        %v1159 = vmul.f32 %v1143, 0.5
        %v1160 = vmul.f32 %v1144, 0.5
        %v1161 = vmul.f32 %v1145, 0.5
        %v1162 = vmul.f32 %v1146, 0.5
        %v1163 = vmul.f32 %v1147, 0.5
        %v1164 = vmul.f32 %v1148, 0.5
        %v1165 = vmul.f32 %v1149, 0.5
        %v1166 = vmul.f32 %v1150, 0.5
        %v1167 = vmul.f32 %v1151, 0.5
        %v1168 = vadd.f32 %v1152, 0.5
        %v1169 = vadd.f32 %v1153, 0.5
        %v1170 = vadd.f32 %v1154, 0.5
        %v1171 = vadd.f32 %v1155, 0.5
        %v1172 = vadd.f32 %v1156, 0.5
        %v1173 = vadd.f32 %v1157, 0.5
        %v1174 = vadd.f32 %v1158, 0.5
        %v1175 = vadd.f32 %v1159, 0.5
        %v1176 = vadd.f32 %v1160, 0.5
        %v1177 = vadd.f32 %v1161, 0.5
        %v1178 = vadd.f32 %v1162, 0.5
        %v1179 = vadd.f32 %v1163, 0.5
        %v1180 = vadd.f32 %v1164, 0.5
        %v1181 = vadd.f32 %v1165, 0.5
        %v1182 = vadd.f32 %v1166, 0.5
        %v1183 = vadd.f32 %v1167, 0.5
        %1184 = vst [vmem:[%s414] sm:$0xff] %v1168
        %1185 = vst [vmem:[%s414 + $0x8] sm:$0xff] %v1169
        %1186 = vst [vmem:[%s414 + $0x10] sm:$0xff] %v1170
        %1187 = vst [vmem:[%s414 + $0x18] sm:$0xff] %v1171
        %1188 = vst [vmem:[%s414 + $0x20] sm:$0xff] %v1172
        %1189 = vst [vmem:[%s414 + $0x28] sm:$0xff] %v1173
        %1190 = vst [vmem:[%s414 + $0x30] sm:$0xff] %v1174
        %1191 = vst [vmem:[%s414 + $0x38] sm:$0xff] %v1175
        %1192 = vst [vmem:[%s414 + $0x40] sm:$0xff] %v1176
        %1193 = vst [vmem:[%s414 + $0x48] sm:$0xff] %v1177
        %1194 = vst [vmem:[%s414 + $0x50] sm:$0xff] %v1178
        %1195 = vst [vmem:[%s414 + $0x58] sm:$0xff] %v1179
        %1196 = vst [vmem:[%s414 + $0x60] sm:$0xff] %v1180
        %1197 = vst [vmem:[%s414 + $0x68] sm:$0xff] %v1181
        %1198 = vst [vmem:[%s414 + $0x70] sm:$0xff] %v1182
        %1199 = vst [vmem:[%s414 + $0x78] sm:$0xff] %v1183
        %v1200 = vmax.f32 %v1073, 0.0
        %v1201 = vmax.f32 %v1076, 0.0
        %v1202 = vmax.f32 %v1079, 0.0
        %v1203 = vmax.f32 %v1082, 0.0
        %v1204 = vmax.f32 %v1085, 0.0
        %v1205 = vmax.f32 %v1088, 0.0
        %v1206 = vmax.f32 %v1091, 0.0
        %v1207 = vmax.f32 %v1094, 0.0
        %v1208 = vmax.f32 %v1097, 0.0
        %v1209 = vmax.f32 %v1100, 0.0
        %v1210 = vmax.f32 %v1103, 0.0
        %v1211 = vmax.f32 %v1106, 0.0
        %v1212 = vmax.f32 %v1109, 0.0
        %v1213 = vmax.f32 %v1112, 0.0
        %v1214 = vmax.f32 %v1115, 0.0
        %v1215 = vmax.f32 %v1118, 0.0
        %v1216 = vand.u32 2147483647, %v1073
        %v1217 = vand.u32 2147483647, %v1076
        %v1218 = vand.u32 2147483647, %v1079
        %v1219 = vand.u32 2147483647, %v1082
        %v1220 = vand.u32 2147483647, %v1085
        %v1221 = vand.u32 2147483647, %v1088
        %v1222 = vand.u32 2147483647, %v1091
        %v1223 = vand.u32 2147483647, %v1094
        %v1224 = vand.u32 2147483647, %v1097
        %v1225 = vand.u32 2147483647, %v1100
        %v1226 = vand.u32 2147483647, %v1103
        %v1227 = vand.u32 2147483647, %v1106
        %v1228 = vand.u32 2147483647, %v1109
        %v1229 = vand.u32 2147483647, %v1112
        %v1230 = vand.u32 2147483647, %v1115
        %v1231 = vand.u32 2147483647, %v1118
        %v1232 = vsub.f32 0.0, %v1216
        %v1233 = vsub.f32 0.0, %v1217
        %v1234 = vsub.f32 0.0, %v1218
        %v1235 = vsub.f32 0.0, %v1219
        %v1236 = vsub.f32 0.0, %v1220
        %v1237 = vsub.f32 0.0, %v1221
        %v1238 = vsub.f32 0.0, %v1222
        %v1239 = vsub.f32 0.0, %v1223
        %v1240 = vsub.f32 0.0, %v1224
        %v1241 = vsub.f32 0.0, %v1225
        %v1242 = vsub.f32 0.0, %v1226
        %v1243 = vsub.f32 0.0, %v1227
        %v1244 = vsub.f32 0.0, %v1228
        %v1245 = vsub.f32 0.0, %v1229
        %v1246 = vsub.f32 0.0, %v1230
        %v1247 = vsub.f32 0.0, %v1231
        %v1248 = vmul.f32 %v1232, 1.442695
        %v1249 = vpow.pop %v1248
        %v1250 = vmul.f32 %v1233, 1.442695
        %v1251 = vpow.pop %v1250
        %v1252 = vmul.f32 %v1234, 1.442695
        %v1253 = vpow.pop %v1252
        %v1254 = vmul.f32 %v1235, 1.442695
        %v1255 = vpow.pop %v1254
        %v1256 = vmul.f32 %v1236, 1.442695
        %v1257 = vpow.pop %v1256
        %v1258 = vmul.f32 %v1237, 1.442695
        %v1259 = vpow.pop %v1258
        %v1260 = vmul.f32 %v1238, 1.442695
        %v1261 = vpow.pop %v1260
        %v1262 = vmul.f32 %v1239, 1.442695
        %v1263 = vpow.pop %v1262
        %v1264 = vmul.f32 %v1240, 1.442695
        %v1265 = vpow.pop %v1264
        %v1266 = vmul.f32 %v1241, 1.442695
        %v1267 = vpow.pop %v1266
        %v1268 = vmul.f32 %v1242, 1.442695
        %v1269 = vpow.pop %v1268
        %v1270 = vmul.f32 %v1243, 1.442695
        %v1271 = vpow.pop %v1270
        %v1272 = vmul.f32 %v1244, 1.442695
        %v1273 = vpow.pop %v1272
        %v1274 = vmul.f32 %v1245, 1.442695
        %v1275 = vpow.pop %v1274
        %v1276 = vmul.f32 %v1246, 1.442695
        %v1277 = vpow.pop %v1276
        %v1278 = vmul.f32 %v1247, 1.442695
        %v1279 = vpow.pop %v1278
        %v1280 = vadd.f32 %v1249, 1.0
        %v1281 = vadd.f32 %v1251, 1.0
        %v1282 = vadd.f32 %v1253, 1.0
        %v1283 = vadd.f32 %v1255, 1.0
        %v1284 = vadd.f32 %v1257, 1.0
        %v1285 = vadd.f32 %v1259, 1.0
        %v1286 = vadd.f32 %v1261, 1.0
        %v1287 = vadd.f32 %v1263, 1.0
        %v1288 = vadd.f32 %v1265, 1.0
        %v1289 = vadd.f32 %v1267, 1.0
        %v1290 = vadd.f32 %v1269, 1.0
        %v1291 = vadd.f32 %v1271, 1.0
        %v1292 = vadd.f32 %v1273, 1.0
        %v1293 = vadd.f32 %v1275, 1.0
        %v1294 = vadd.f32 %v1277, 1.0
        %v1295 = vadd.f32 %v1279, 1.0
        %v1296 = vlog2.pop %v1280
        %v1297 = vmul.f32 %v1296, 0.6931472
        %v1298 = vlog2.pop %v1281
        %v1299 = vmul.f32 %v1298, 0.6931472
        %v1300 = vlog2.pop %v1282
        %v1301 = vmul.f32 %v1300, 0.6931472
        %v1302 = vlog2.pop %v1283
        %v1303 = vmul.f32 %v1302, 0.6931472
        %v1304 = vlog2.pop %v1284
        %v1305 = vmul.f32 %v1304, 0.6931472
        %v1306 = vlog2.pop %v1285
        %v1307 = vmul.f32 %v1306, 0.6931472
        %v1308 = vlog2.pop %v1286
        %v1309 = vmul.f32 %v1308, 0.6931472
        %v1310 = vlog2.pop %v1287
        %v1311 = vmul.f32 %v1310, 0.6931472
        %v1312 = vlog2.pop %v1288
        %v1313 = vmul.f32 %v1312, 0.6931472
        %v1314 = vlog2.pop %v1289
        %v1315 = vmul.f32 %v1314, 0.6931472
        %v1316 = vlog2.pop %v1290
        %v1317 = vmul.f32 %v1316, 0.6931472
        %v1318 = vlog2.pop %v1291
        %v1319 = vmul.f32 %v1318, 0.6931472
        %v1320 = vlog2.pop %v1292
        %v1321 = vmul.f32 %v1320, 0.6931472
        %v1322 = vlog2.pop %v1293
        %v1323 = vmul.f32 %v1322, 0.6931472
        %v1324 = vlog2.pop %v1294
        %v1325 = vmul.f32 %v1324, 0.6931472
        %v1326 = vlog2.pop %v1295
        %v1327 = vmul.f32 %v1326, 0.6931472
        %v1328 = vadd.f32 %v1200, %v1297
        %v1329 = vadd.f32 %v1201, %v1299
        %v1330 = vadd.f32 %v1202, %v1301
        %v1331 = vadd.f32 %v1203, %v1303
        %v1332 = vadd.f32 %v1204, %v1305
        %v1333 = vadd.f32 %v1205, %v1307
        %v1334 = vadd.f32 %v1206, %v1309
        %v1335 = vadd.f32 %v1207, %v1311
        %v1336 = vadd.f32 %v1208, %v1313
        %v1337 = vadd.f32 %v1209, %v1315
        %v1338 = vadd.f32 %v1210, %v1317
        %v1339 = vadd.f32 %v1211, %v1319
        %v1340 = vadd.f32 %v1212, %v1321
        %v1341 = vadd.f32 %v1213, %v1323
        %v1342 = vadd.f32 %v1214, %v1325
        %v1343 = vadd.f32 %v1215, %v1327
        %v1344 = vmul.f32 %v441, %v1073
        %v1345 = vmul.f32 %v442, %v1076
        %v1346 = vmul.f32 %v443, %v1079
        %v1347 = vmul.f32 %v444, %v1082
        %v1348 = vmul.f32 %v445, %v1085
        %v1349 = vmul.f32 %v446, %v1088
        %v1350 = vmul.f32 %v447, %v1091
        %v1351 = vmul.f32 %v448, %v1094
        %v1352 = vmul.f32 %v449, %v1097
        %v1353 = vmul.f32 %v450, %v1100
        %v1354 = vmul.f32 %v451, %v1103
        %v1355 = vmul.f32 %v452, %v1106
        %v1356 = vmul.f32 %v453, %v1109
        %v1357 = vmul.f32 %v454, %v1112
        %v1358 = vmul.f32 %v455, %v1115
        %v1359 = vmul.f32 %v456, %v1118
        %v1360 = vsub.f32 %v1328, %v1344
        %v1361 = vsub.f32 %v1329, %v1345
        %v1362 = vsub.f32 %v1330, %v1346
        %v1363 = vsub.f32 %v1331, %v1347
        %v1364 = vsub.f32 %v1332, %v1348
        %v1365 = vsub.f32 %v1333, %v1349
        %v1366 = vsub.f32 %v1334, %v1350
        %v1367 = vsub.f32 %v1335, %v1351
        %v1368 = vsub.f32 %v1336, %v1352
        %v1369 = vsub.f32 %v1337, %v1353
        %v1370 = vsub.f32 %v1338, %v1354
        %v1371 = vsub.f32 %v1339, %v1355
        %v1372 = vsub.f32 %v1340, %v1356
        %v1373 = vsub.f32 %v1341, %v1357
        %v1374 = vsub.f32 %v1342, %v1358
        %v1375 = vsub.f32 %v1343, %v1359
        %1376 = vadd.xlane.f32.xlu0 %v1360
        %v1377 = vpop.xlane.xlu0 %1376
        %1378 = vadd.xlane.f32.xlu0 %v1361
        %v1379 = vpop.xlane.xlu0 %1378
        %1380 = vadd.xlane.f32.xlu0 %v1362
        %v1381 = vpop.xlane.xlu0 %1380
        %1382 = vadd.xlane.f32.xlu0 %v1363
        %v1383 = vpop.xlane.xlu0 %1382
        %1384 = vadd.xlane.f32.xlu0 %v1364
        %v1385 = vpop.xlane.xlu0 %1384
        %1386 = vadd.xlane.f32.xlu0 %v1365
        %v1387 = vpop.xlane.xlu0 %1386
        %1388 = vadd.xlane.f32.xlu0 %v1366
        %v1389 = vpop.xlane.xlu0 %1388
        %1390 = vadd.xlane.f32.xlu0 %v1367
        %v1391 = vpop.xlane.xlu0 %1390
        %1392 = vadd.xlane.f32.xlu0 %v1368
        %v1393 = vpop.xlane.xlu0 %1392
        %1394 = vadd.xlane.f32.xlu0 %v1369
        %v1395 = vpop.xlane.xlu0 %1394
        %1396 = vadd.xlane.f32.xlu0 %v1370
        %v1397 = vpop.xlane.xlu0 %1396
        %1398 = vadd.xlane.f32.xlu0 %v1371
        %v1399 = vpop.xlane.xlu0 %1398
        %1400 = vadd.xlane.f32.xlu0 %v1372
        %v1401 = vpop.xlane.xlu0 %1400
        %1402 = vadd.xlane.f32.xlu0 %v1373
        %v1403 = vpop.xlane.xlu0 %1402
        %1404 = vadd.xlane.f32.xlu0 %v1374
        %v1405 = vpop.xlane.xlu0 %1404
        %1406 = vadd.xlane.f32.xlu0 %v1375
        %v1407 = vpop.xlane.xlu0 %1406
        %v1408 = vmul.f32 %v678, %v678
        %v1409 = vmul.f32 %v681, %v681
        %v1410 = vmul.f32 %v684, %v684
        %v1411 = vmul.f32 %v687, %v687
        %v1412 = vmul.f32 %v690, %v690
        %v1413 = vmul.f32 %v693, %v693
        %v1414 = vmul.f32 %v696, %v696
        %v1415 = vmul.f32 %v699, %v699
        %v1416 = vmul.f32 %v702, %v702
        %v1417 = vmul.f32 %v705, %v705
        %v1418 = vmul.f32 %v708, %v708
        %v1419 = vmul.f32 %v711, %v711
        %v1420 = vmul.f32 %v714, %v714
        %v1421 = vmul.f32 %v717, %v717
        %v1422 = vmul.f32 %v720, %v720
        %v1423 = vmul.f32 %v723, %v723
        %v1424 = vadd.f32 %v870, %v1408
        %v1425 = vadd.f32 %v871, %v1409
        %v1426 = vadd.f32 %v872, %v1410
        %v1427 = vadd.f32 %v873, %v1411
        %v1428 = vadd.f32 %v874, %v1412
        %v1429 = vadd.f32 %v875, %v1413
        %v1430 = vadd.f32 %v876, %v1414
        %v1431 = vadd.f32 %v877, %v1415
        %v1432 = vadd.f32 %v878, %v1416
        %v1433 = vadd.f32 %v879, %v1417
        %v1434 = vadd.f32 %v880, %v1418
        %v1435 = vadd.f32 %v881, %v1419
        %v1436 = vadd.f32 %v882, %v1420
        %v1437 = vadd.f32 %v883, %v1421
        %v1438 = vadd.f32 %v884, %v1422
        %v1439 = vadd.f32 %v885, %v1423
        %v1440 = vsub.f32 %v1424, 1.0
        %v1441 = vsub.f32 %v1425, 1.0
        %v1442 = vsub.f32 %v1426, 1.0
        %v1443 = vsub.f32 %v1427, 1.0
        %v1444 = vsub.f32 %v1428, 1.0
        %v1445 = vsub.f32 %v1429, 1.0
        %v1446 = vsub.f32 %v1430, 1.0
        %v1447 = vsub.f32 %v1431, 1.0
        %v1448 = vsub.f32 %v1432, 1.0
        %v1449 = vsub.f32 %v1433, 1.0
        %v1450 = vsub.f32 %v1434, 1.0
        %v1451 = vsub.f32 %v1435, 1.0
        %v1452 = vsub.f32 %v1436, 1.0
        %v1453 = vsub.f32 %v1437, 1.0
        %v1454 = vsub.f32 %v1438, 1.0
        %v1455 = vsub.f32 %v1439, 1.0
        %v1456 = vsub.f32 %v1440, %v743
        %v1457 = vsub.f32 %v1441, %v746
        %v1458 = vsub.f32 %v1442, %v749
        %v1459 = vsub.f32 %v1443, %v752
        %v1460 = vsub.f32 %v1444, %v755
        %v1461 = vsub.f32 %v1445, %v758
        %v1462 = vsub.f32 %v1446, %v761
        %v1463 = vsub.f32 %v1447, %v764
        %v1464 = vsub.f32 %v1448, %v767
        %v1465 = vsub.f32 %v1449, %v770
        %v1466 = vsub.f32 %v1450, %v773
        %v1467 = vsub.f32 %v1451, %v776
        %v1468 = vsub.f32 %v1452, %v779
        %v1469 = vsub.f32 %v1453, %v782
        %v1470 = vsub.f32 %v1454, %v785
        %v1471 = vsub.f32 %v1455, %v788
        %1472 = vadd.xlane.f32.xlu0 %v1456
        %v1473 = vpop.xlane.xlu0 %1472
        %1474 = vadd.xlane.f32.xlu0 %v1457
        %v1475 = vpop.xlane.xlu0 %1474
        %1476 = vadd.xlane.f32.xlu0 %v1458
        %v1477 = vpop.xlane.xlu0 %1476
        %1478 = vadd.xlane.f32.xlu0 %v1459
        %v1479 = vpop.xlane.xlu0 %1478
        %1480 = vadd.xlane.f32.xlu0 %v1460
        %v1481 = vpop.xlane.xlu0 %1480
        %1482 = vadd.xlane.f32.xlu0 %v1461
        %v1483 = vpop.xlane.xlu0 %1482
        %1484 = vadd.xlane.f32.xlu0 %v1462
        %v1485 = vpop.xlane.xlu0 %1484
        %1486 = vadd.xlane.f32.xlu0 %v1463
        %v1487 = vpop.xlane.xlu0 %1486
        %1488 = vadd.xlane.f32.xlu0 %v1464
        %v1489 = vpop.xlane.xlu0 %1488
        %1490 = vadd.xlane.f32.xlu0 %v1465
        %v1491 = vpop.xlane.xlu0 %1490
        %1492 = vadd.xlane.f32.xlu0 %v1466
        %v1493 = vpop.xlane.xlu0 %1492
        %1494 = vadd.xlane.f32.xlu0 %v1467
        %v1495 = vpop.xlane.xlu0 %1494
        %1496 = vadd.xlane.f32.xlu0 %v1468
        %v1497 = vpop.xlane.xlu0 %1496
        %1498 = vadd.xlane.f32.xlu0 %v1469
        %v1499 = vpop.xlane.xlu0 %1498
        %1500 = vadd.xlane.f32.xlu0 %v1470
        %v1501 = vpop.xlane.xlu0 %1500
        %1502 = vadd.xlane.f32.xlu0 %v1471
        %v1503 = vpop.xlane.xlu0 %1502
        %v1504 = vmul.f32 %v1473, 0.5
        %v1505 = vmul.f32 %v1475, 0.5
        %v1506 = vmul.f32 %v1477, 0.5
        %v1507 = vmul.f32 %v1479, 0.5
        %v1508 = vmul.f32 %v1481, 0.5
        %v1509 = vmul.f32 %v1483, 0.5
        %v1510 = vmul.f32 %v1485, 0.5
        %v1511 = vmul.f32 %v1487, 0.5
        %v1512 = vmul.f32 %v1489, 0.5
        %v1513 = vmul.f32 %v1491, 0.5
        %v1514 = vmul.f32 %v1493, 0.5
        %v1515 = vmul.f32 %v1495, 0.5
        %v1516 = vmul.f32 %v1497, 0.5
        %v1517 = vmul.f32 %v1499, 0.5
        %v1518 = vmul.f32 %v1501, 0.5
        %v1519 = vmul.f32 %v1503, 0.5
        %v1520 = vadd.f32 %v1377, %v1504
        %v1521 = vadd.f32 %v1379, %v1505
        %v1522 = vadd.f32 %v1381, %v1506
        %v1523 = vadd.f32 %v1383, %v1507
        %v1524 = vadd.f32 %v1385, %v1508
        %v1525 = vadd.f32 %v1387, %v1509
        %v1526 = vadd.f32 %v1389, %v1510
        %v1527 = vadd.f32 %v1391, %v1511
        %v1528 = vadd.f32 %v1393, %v1512
        %v1529 = vadd.f32 %v1395, %v1513
        %v1530 = vadd.f32 %v1397, %v1514
        %v1531 = vadd.f32 %v1399, %v1515
        %v1532 = vadd.f32 %v1401, %v1516
        %v1533 = vadd.f32 %v1403, %v1517
        %v1534 = vadd.f32 %v1405, %v1518
        %v1535 = vadd.f32 %v1407, %v1519
        %vm1536 = vcmask 7168
        %1537 = vst.msk [vmem:[%s439] sm:$0xff] %vm1536, %v1520
        %1538 = vst.msk [vmem:[%s439 + $0x8] sm:$0xff] %vm1536, %v1521
        %1539 = vst.msk [vmem:[%s439 + $0x10] sm:$0xff] %vm1536, %v1522
        %1540 = vst.msk [vmem:[%s439 + $0x18] sm:$0xff] %vm1536, %v1523
        %1541 = vst.msk [vmem:[%s439 + $0x20] sm:$0xff] %vm1536, %v1524
        %1542 = vst.msk [vmem:[%s439 + $0x28] sm:$0xff] %vm1536, %v1525
        %1543 = vst.msk [vmem:[%s439 + $0x30] sm:$0xff] %vm1536, %v1526
        %1544 = vst.msk [vmem:[%s439 + $0x38] sm:$0xff] %vm1536, %v1527
        %1545 = vst.msk [vmem:[%s439 + $0x40] sm:$0xff] %vm1536, %v1528
        %1546 = vst.msk [vmem:[%s439 + $0x48] sm:$0xff] %vm1536, %v1529
        %1547 = vst.msk [vmem:[%s439 + $0x50] sm:$0xff] %vm1536, %v1530
        %1548 = vst.msk [vmem:[%s439 + $0x58] sm:$0xff] %vm1536, %v1531
        %1549 = vst.msk [vmem:[%s439 + $0x60] sm:$0xff] %vm1536, %v1532
        %1550 = vst.msk [vmem:[%s439 + $0x68] sm:$0xff] %vm1536, %v1533
        %1551 = vst.msk [vmem:[%s439 + $0x70] sm:$0xff] %vm1536, %v1534
        %1552 = vst.msk [vmem:[%s439 + $0x78] sm:$0xff] %vm1536, %v1535
        %s1553 = sand.u32 %s255, 1
        %s1554 = scalar_lea.sflag [#allocation4], %s1553
        %s1555 = sand.u32 %s255, 1
        %s1556 = smul.addr %s1555, 128
        %s1557 = scalar_lea.vmem [#allocation5], %s1556
        %s1558 = smul.u32 16, %s27
        %p1559 = scmp.lt.s32.totalorder %s1558, 31
        %s1560 = scalar_select %p1559, %s1558, 31
        %s1561 = smul.addr %s1560, 8
        %s1562 = scalar_lea.vmem %s11, %s1561
        // Predicated region
        $region65: #{vae_forward.1} parent=59 // pred_check
          %p1563 = pneg %p265
        $region66: #{vae_forward.1} parent=59 // pred_check_branch
          %1565 = sbr.rel (%p1563) target = $region68
        $region67: #{vae_forward.1} parent=59 // pred_region
          %s1566 = smul.u32 16, %s27
          %1568 = vsyncadd %s1554, 0
          %s1569 = smul.addr %s1566, 8
          %s1570 = scalar_lea.hbm %s10, %s1569
          %s1571 = sshll.u32 %s1557, 4
          %s1572 = int_to_ptr.vmem [resolvable:$true] %s1571
          %s1573 = sshll.u32 %s1570, 4
          %s1574 = int_to_ptr.hbm [resolvable:$true] %s1573
          %1579 = dma.vmem_to_hbm [thread:$0]  %s1572, 2048, %s1574, %s1554, 128, 128, 8
        $region68: #{vae_forward.1} parent=59 // pred_fallthru
          _
        // Predicated region
        $region69: #{vae_forward.1} parent=59 // pred_check
          %p1580 = pneg %p291
        $region70: #{vae_forward.1} parent=59 // pred_check_branch
          %1582 = sbr.rel (%p1580) target = $region72
        $region71: #{vae_forward.1} parent=59 // pred_region
          %s1583 = smul.u32 16, %s27
        $region72: #{vae_forward.1} parent=59 // pred_fallthru
          _
      $region60: #{vae_forward.1} parent=5 // pred_fallthru
        _
      %p1584 = scmp.le.s32.totalorder 2, %s22
      // Predicated region
      $region73: #{vae_forward.1} parent=5 // pred_check
        %p1585 = pneg %p1584
      $region74: #{vae_forward.1} parent=5 // pred_check_branch
        %1587 = sbr.rel (%p1585) target = $region76
      $region75: #{vae_forward.1} parent=5 // pred_region
        %s1588 = ssub.s32 %s22, 2
        // Predicated region
        $region77: #{vae_forward.1} parent=75 // pred_check
          %p1589 = pneg %p271
        $region78: #{vae_forward.1} parent=75 // pred_check_branch
          %1591 = sbr.rel (%p1589) target = $region80
        $region79: #{vae_forward.1} parent=75 // pred_region
          %s1592 = sand.u32 %s256, 1
          %s1593 = scalar_lea.sflag [#allocation4], %s1592
          %s1594 = sand.u32 %s256, 1
          %s1595 = smul.addr %s1594, 128
          %s1596 = scalar_lea.vmem [#allocation5], %s1595
          %1598 = dma.done %s1593, 2048
        $region80: #{vae_forward.1} parent=75 // pred_fallthru
          _
        // Predicated region
        $region81: #{vae_forward.1} parent=75 // pred_check
          %p1599 = pneg %p297
        $region82: #{vae_forward.1} parent=75 // pred_check_branch
          %1601 = sbr.rel (%p1599) target = $region84
        $region83: #{vae_forward.1} parent=75 // pred_region
          %s1602 = smul.u32 16, %s28
          %p1603 = scmp.lt.s32.totalorder %s1602, 31
          %s1604 = scalar_select %p1603, %s1602, 31
          %s1605 = smul.addr %s1604, 8
          %s1606 = scalar_lea.vmem %s11, %s1605
        $region84: #{vae_forward.1} parent=75 // pred_fallthru
          _
      $region76: #{vae_forward.1} parent=5 // pred_fallthru
        _
    $region6: #{vae_forward.1} parent=1 // loop_footer
      %s26 = sadd.s32 1, %s22
    $region7: #{vae_forward.1} parent=1 // loop_footer_branch
      %21 = sbr.rel target = $region3
    $region8: #{vae_forward.1} parent=1 // loop_exit
      _
    %1607 = vsyncpa [#allocation3], 1
    %s1608 = scalar_lea.sflag [#allocation3], 1
    %1609 = vsyncpa %s1608, 1
    %1610 = vsyncpa [#allocation4], 1
    %s1611 = scalar_lea.sflag [#allocation4], 1
    %1612 = vsyncpa %s1611, 1

</llo_original>
